<compile_context>
chip_gen: v5e
topology: v5e:2x2
jax: 0.10.0
libtpu: 0.0.40
codegen_flags: <defaults>
</compile_context>

<pallas_src>
import jax
import jax.numpy as jnp
from jax.experimental import pallas as pl
from jax.experimental.pallas import tpu as pltpu


def _make_downblock_kernel(H, W, P):
    """Kernel factory closing over static geometry (H, W, halo width P)."""
    HW = H * W

    def kernel(x_ref, w1_ref, b1_ref, w2_ref, b2_ref, pool_ref, feat_ref, scr_ref):
        # x_ref   : (1, Cin_p, 2*P + H*W)   NCHW-flattened input, P zero lanes/side
        # w1_ref  : (Cout_p, 9*Cin_p)       BN-folded conv1 weights (tap-major, ci-minor)
        # b1_ref  : (Cout_p, 1)
        # w2_ref  : (Cout_p, 9*Cout_p)      BN-folded conv2 weights
        # b2_ref  : (Cout_p, 1)
        # pool_ref: (1, Cout_p, H*W//4)
        # feat_ref: (1, Cout_p, H*W)
        # scr_ref : (Cout_p, 2*P + H*W)     zero-lane-padded VMEM scratch (conv2 halo)
        Cin_p = x_ref.shape[1]
        Cout_p = feat_ref.shape[1]

        # Zero only the two small (Cout_p, P) pad strips; the interior is fully
        # overwritten every step.  (A one-time pl.when(program_id==0) zero would
        # be unsafe under "parallel" grid semantics.)
        scr_ref[:, pl.ds(0, P)] = jnp.zeros((Cout_p, P), jnp.float32)
        scr_ref[:, pl.ds(P + HW, P)] = jnp.zeros((Cout_p, P), jnp.float32)

        # Row-boundary masks for the +-1 horizontal taps (vertical halo is
        # handled by the zero lane padding).
        lane = jax.lax.broadcasted_iota(jnp.int32, (1, HW), 1)
        xcol = lane % W
        not_left = xcol != 0            # valid output lanes for dx = -1
        not_right = xcol != (W - 1)     # valid output lanes for dx = +1

        def im2col(read, C, dtype):
            # Hoist the boundary masks out of the 9-tap loop: JAX does not CSE
            # broadcast_in_dim, so materialize the (C, HW) masks once per conv.
            m_left = jnp.broadcast_to(not_left, (C, HW))
            m_right = jnp.broadcast_to(not_right, (C, HW))
            pieces = []
            for dy in (-1, 0, 1):
                for dx in (-1, 0, 1):
                    piece = read(P + dy * W + dx)            # (C, HW) f32
                    if dx == -1:
                        piece = jnp.where(m_left, piece, 0.0)
                    elif dx == 1:
                        piece = jnp.where(m_right, piece, 0.0)
                    pieces.append(piece.astype(dtype))       # cast per piece (bf16 path)
            # C is a multiple of the (bf16) sublane packing -> pure vreg stacking.
            return jnp.concatenate(pieces, axis=0)           # (9*C, HW)

        # ---- conv1 + bias + ReLU: single tap-fused MXU matmul (f32 accumulate) ----
        cols1 = im2col(lambda off: x_ref[0, :, pl.ds(off, HW)], Cin_p, w1_ref.dtype)
        z1 = jnp.dot(w1_ref[...], cols1, preferred_element_type=jnp.float32)
        z1 = jnp.maximum(z1 + b1_ref[...], 0.0)              # (Cout_p, HW) f32

        # ---- conv2 + bias + ReLU (shifted views via the zero-lane-padded scratch) ----
        scr_ref[:, pl.ds(P, HW)] = z1
        cols2 = im2col(lambda off: scr_ref[:, pl.ds(off, HW)], Cout_p, w2_ref.dtype)
        z2 = jnp.dot(w2_ref[...], cols2, preferred_element_type=jnp.float32)
        z2 = jnp.maximum(z2 + b2_ref[...], 0.0)              # (Cout_p, HW) f32
        feat_ref[0] = z2.astype(feat_ref.dtype)              # lane-dense store

        # ---- MaxPool2d(2): linear-cost compaction ----
        # Per output row: vertical 2-row max (contiguous register slices), then
        # even/odd column selection with two tiny (W, W/2) 0/1 matmuls (exact:
        # exactly one 1 per column).  No O(HW^2) selection operand, no scratch
        # round-trip of z2.
        r = jax.lax.broadcasted_iota(jnp.int32, (W, W // 2), 0)
        c = jax.lax.broadcasted_iota(jnp.int32, (W, W // 2), 1)
        sel_even = (r == 2 * c).astype(jnp.float32)
        sel_odd = (r == 2 * c + 1).astype(jnp.float32)

        rows = []
        for yy in range(H // 2):
            a = 2 * yy * W
            rowmax = jnp.maximum(z2[:, a:a + W], z2[:, a + W:a + 2 * W])   # (Cout_p, W)
            even = jnp.dot(rowmax, sel_even, preferred_element_type=jnp.float32)
            odd = jnp.dot(rowmax, sel_odd, preferred_element_type=jnp.float32)
            rows.append(jnp.maximum(even, odd))              # (Cout_p, W//2)
        pooled = jnp.concatenate(rows, axis=-1)              # (Cout_p, HW//4)
        pool_ref[0] = pooled.astype(pool_ref.dtype)          # one lane-dense store

    return kernel


def downblock_forward(x_nchw, params, *, use_bf16_matmul=True):
    """x_nchw: (B, Cin, H, W) float32.  Returns (pooled, feat) in NCHW, like PyTorch."""
    w1, b1, w2, b2 = params                 # w: (3,3,ci,co) HWIO, b: (co,), BN-folded
    B, Cin, H, W = x_nchw.shape
    Cout = w1.shape[-1]
    assert H % 2 == 0 and W % 2 == 0

    mm_dtype = jnp.bfloat16 if use_bf16_matmul else jnp.float32
    align = 16 if use_bf16_matmul else 8    # bf16 packs 16 rows / sublane-vreg
    Cin_p = ((Cin + align - 1) // align) * align
    Cout_p = ((Cout + align - 1) // align) * align
    HW = H * W
    # Lane-align the tap offsets when W is already a lane multiple (TrackNet
    # W=512); otherwise the minimal W+1 halo.
    P = W + 128 if W % 128 == 0 else W + 1

    # NCHW -> (B, Cin_p, HW) flat + P zero lanes each side (vertical conv halo
    # lives in-lane).  No NHWC transpose, no 2-D spatial pad.
    x = x_nchw.astype(jnp.float32).reshape(B, Cin, HW)
    x = jnp.pad(x, ((0, 0), (0, Cin_p - Cin), (P, P)))

    def pack_w(w, ci_p, co_p):
        ci, co = w.shape[2], w.shape[3]
        wp = jnp.pad(w.astype(jnp.float32),
                     ((0, 0), (0, 0), (0, ci_p - ci), (0, co_p - co)))
        # (3,3,ci_p,co_p) -> (co_p, ky, kx, ci_p) -> (co_p, 9*ci_p): matches kernel tap order.
        return jnp.transpose(wp, (3, 0, 1, 2)).reshape(co_p, 9 * ci_p).astype(mm_dtype)

    def pack_b(b, co_p):
        return jnp.pad(b.astype(jnp.float32), (0, co_p - b.shape[0])).reshape(co_p, 1)

    w1m = pack_w(w1, Cin_p, Cout_p)
    w2m = pack_w(w2, Cout_p, Cout_p)
    b1m = pack_b(b1, Cout_p)
    b2m = pack_b(b2, Cout_p)

    kernel = _make_downblock_kernel(H, W, P)

    out_shapes = (
        jax.ShapeDtypeStruct((B, Cout_p, HW // 4), jnp.float32),   # pooled (flat NCHW)
        jax.ShapeDtypeStruct((B, Cout_p, HW), jnp.float32),        # pre-pool feature
    )
    grid_spec = pltpu.PrefetchScalarGridSpec(
        num_scalar_prefetch=0,
        grid=(B,),
        in_specs=[
            pl.BlockSpec((1, Cin_p, HW + 2 * P), lambda b: (b, 0, 0)),
            pl.BlockSpec((Cout_p, 9 * Cin_p), lambda b: (0, 0)),
            pl.BlockSpec((Cout_p, 1), lambda b: (0, 0)),
            pl.BlockSpec((Cout_p, 9 * Cout_p), lambda b: (0, 0)),
            pl.BlockSpec((Cout_p, 1), lambda b: (0, 0)),
        ],
        out_specs=[
            pl.BlockSpec((1, Cout_p, HW // 4), lambda b: (b, 0, 0)),
            pl.BlockSpec((1, Cout_p, HW), lambda b: (b, 0, 0)),
        ],
        scratch_shapes=[pltpu.VMEM((Cout_p, HW + 2 * P), jnp.float32)],
    )

    conv_flops = 2 * B * HW * Cout_p * 9 * (Cin_p + Cout_p)
    pool_flops = 2 * B * (H // 2) * 2 * Cout_p * W * (W // 2)
    bytes_accessed = (x.size * 4
                      + w1m.size * w1m.dtype.itemsize
                      + w2m.size * w2m.dtype.itemsize
                      + (b1m.size + b2m.size) * 4
                      + B * Cout_p * HW * 4 + B * Cout_p * (HW // 4) * 4)

    pooled, feat = pl.pallas_call(
        kernel,
        out_shape=out_shapes,
        grid_spec=grid_spec,
        compiler_params=pltpu.CompilerParams(
            dimension_semantics=("parallel",)),
        cost_estimate=pl.CostEstimate(flops=conv_flops + pool_flops,
                                      transcendentals=0,
                                      bytes_accessed=bytes_accessed),
    )(x, w1m, b1m, w2m, b2m)

    # Drop channel padding (no-op when Cout is already aligned) and reshape back
    # to NCHW for free.
    pooled = pooled[:, :Cout].reshape(B, Cout, H // 2, W // 2)
    feat = feat[:, :Cout].reshape(B, Cout, H, W)
    return pooled, feat


def init_params(key, cin, cout):
    """Deterministic synthetic params; BatchNorm (eval) folded into conv weight/bias."""
    ks = jax.random.split(key, 8)

    def conv_bn(kw, kb, kg, kbt, ci, co):
        w = 0.1 * jax.random.normal(kw, (3, 3, ci, co), jnp.float32)
        b = 0.1 * jax.random.normal(kb, (co,), jnp.float32)
        gamma = 1.0 + 0.1 * jax.random.normal(kg, (co,), jnp.float32)
        beta = 0.1 * jax.random.normal(kbt, (co,), jnp.float32)
        running_mean = jnp.zeros((co,), jnp.float32)
        running_var = jnp.ones((co,), jnp.float32)
        eps = 1e-5
        scale = gamma / jnp.sqrt(running_var + eps)
        w_eff = w * scale[None, None, None, :]
        b_eff = (b - running_mean) * scale + beta
        return w_eff, b_eff

    w1, b1 = conv_bn(ks[0], ks[1], ks[2], ks[3], cin, cout)
    w2, b2 = conv_bn(ks[4], ks[5], ks[6], ks[7], cout, cout)
    return w1, b1, w2, b2


def reference(x_nchw, params):
    """Pure-JAX reference of DownBlock.forward (eval-mode BN folded the same way)."""
    w1, b1, w2, b2 = params
    x = jnp.transpose(x_nchw, (0, 2, 3, 1))

    def conv_relu(h, w, b):
        y = jax.lax.conv_general_dilated(
            h, w, window_strides=(1, 1), padding="SAME",
            dimension_numbers=("NHWC", "HWIO", "NHWC"))
        return jnp.maximum(y + b.reshape(1, 1, 1, -1), 0.0)

    y = conv_relu(x, w1, b1)
    y = conv_relu(y, w2, b2)
    p = jax.lax.reduce_window(y, -jnp.inf, jax.lax.max,
                              (1, 2, 2, 1), (1, 2, 2, 1), "VALID")
    return jnp.transpose(p, (0, 3, 1, 2)), jnp.transpose(y, (0, 3, 1, 2))


if __name__ == "__main__":
    B, Cin, Cout, H, W = 2, 4, 16, 16, 16
    key = jax.random.PRNGKey(0)
    kx, kp = jax.random.split(key)
    x = jax.random.normal(kx, (B, Cin, H, W), jnp.float32)   # NCHW, like PyTorch
    params = init_params(kp, Cin, Cout)

    ref_pool, ref_feat = reference(x, params)

    # f32 MXU path: tight structural check.
    pooled32, feat32 = downblock_forward(x, params, use_bf16_matmul=False)
    jax.block_until_ready((pooled32, feat32))
    assert pooled32.shape == (B, Cout, H // 2, W // 2)
    assert feat32.shape == (B, Cout, H, W)
    assert jnp.allclose(feat32, ref_feat, rtol=1e-4, atol=1e-4)
    assert jnp.allclose(pooled32, ref_pool, rtol=1e-4, atol=1e-4)

    # bf16-operand MXU path (f32 accumulation): production configuration.
    pooled, feat = downblock_forward(x, params, use_bf16_matmul=True)
    jax.block_until_ready((pooled, feat))
    assert pooled.shape == (B, Cout, H // 2, W // 2)
    assert feat.shape == (B, Cout, H, W)
    assert jnp.allclose(feat, ref_feat, rtol=2e-2, atol=5e-2)
    assert jnp.allclose(pooled, ref_pool, rtol=2e-2, atol=5e-2)

    print("KERNEL_OK")
</pallas_src>

<mosaic_0001>
module attributes {stable_mosaic.version = 11 : i64} {
  func.func @kernel(%arg0: i32, %arg1: memref<1x8x290xf32, #tpu.memory_space<vmem>>, %arg2: memref<16x72xf32, #tpu.memory_space<vmem>>, %arg3: memref<16x1xf32, #tpu.memory_space<vmem>>, %arg4: memref<16x144xf32, #tpu.memory_space<vmem>>, %arg5: memref<16x1xf32, #tpu.memory_space<vmem>>, %arg6: memref<1x16x64xf32, #tpu.memory_space<vmem>>, %arg7: memref<1x16x256xf32, #tpu.memory_space<vmem>>, %arg8: memref<16x290xf32, #tpu.memory_space<vmem>>) attributes {dimension_semantics = [#tpu.dimension_semantics<parallel>], iteration_bounds = array<i64: 2>, scalar_prefetch = 0 : i64, scratch_operands = 1 : i64, tpu.core_type = #tpu.core_type<tc>, window_params = [{transform_indices = @transform_0, window_bounds = array<i64: 1, 8, 290>}, {pipeline_mode = #tpu.pipeline_mode<synchronous>, transform_indices = @transform_1, window_bounds = array<i64: 16, 72>}, {pipeline_mode = #tpu.pipeline_mode<synchronous>, transform_indices = @transform_2, window_bounds = array<i64: 16, 1>}, {pipeline_mode = #tpu.pipeline_mode<synchronous>, transform_indices = @transform_3, window_bounds = array<i64: 16, 144>}, {pipeline_mode = #tpu.pipeline_mode<synchronous>, transform_indices = @transform_4, window_bounds = array<i64: 16, 1>}, {transform_indices = @transform_5, window_bounds = array<i64: 1, 16, 64>}, {transform_indices = @transform_6, window_bounds = array<i64: 1, 16, 256>}]} {
    %cst = arith.constant 0.000000e+00 : f32
    %0 = vector.broadcast %cst : f32 to vector<16x17xf32>
    %c0 = arith.constant 0 : index
    %c0_0 = arith.constant 0 : index
    %1 = vector.load %arg8[%c0, %c0_0] : memref<16x290xf32, #tpu.memory_space<vmem>>, vector<16x17xf32>
    tpu.vector_store %arg8[%c0, %c0_0], %0 {strides = array<i32>} : memref<16x290xf32, #tpu.memory_space<vmem>>, vector<16x17xf32>,
    %cst_1 = arith.constant 0.000000e+00 : f32
    %2 = vector.broadcast %cst_1 : f32 to vector<16x17xf32>
    %c0_2 = arith.constant 0 : index
    %c273 = arith.constant 273 : index
    %3 = vector.load %arg8[%c0_2, %c273] : memref<16x290xf32, #tpu.memory_space<vmem>>, vector<16x17xf32>
    tpu.vector_store %arg8[%c0_2, %c273], %2 {strides = array<i32>} : memref<16x290xf32, #tpu.memory_space<vmem>>, vector<16x17xf32>,
    %4 = tpu.iota {dimensions = array<i32: 1>} : vector<1x256xi32>
    %c16_i32 = arith.constant 16 : i32
    %c0_i32 = arith.constant 0 : i32
    %5 = arith.cmpi eq, %c16_i32, %c0_i32 : i32
    %c1_i32 = arith.constant 1 : i32
    %6 = arith.select %5, %c1_i32, %c16_i32 : i32
    %7 = vector.broadcast %6 : i32 to vector<1x256xi32>
    %8 = arith.remsi %4, %7 : vector<1x256xi32>
    %c0_i32_3 = arith.constant 0 : i32
    %9 = vector.broadcast %c0_i32_3 : i32 to vector<1x256xi32>
    %10 = arith.cmpi ne, %8, %9 : vector<1x256xi32>
    %c0_i32_4 = arith.constant 0 : i32
    %11 = vector.broadcast %c0_i32_4 : i32 to vector<1x256xi32>
    %12 = arith.cmpi slt, %8, %11 : vector<1x256xi32>
    %c0_i32_5 = arith.constant 0 : i32
    %13 = arith.cmpi slt, %6, %c0_i32_5 : i32
    %14 = vector.broadcast %13 : i1 to vector<1x256xi1>
    %15 = vector.broadcast %14 : vector<1x256xi1> to vector<1x256xi1>
    %16 = arith.xori %12, %15 : vector<1x256xi1>
    %17 = arith.andi %16, %10 : vector<1x256xi1>
    %18 = vector.broadcast %6 : i32 to vector<1x256xi32>
    %19 = arith.addi %8, %18 : vector<1x256xi32>
    %20 = arith.select %17, %19, %8 : vector<1x256xi1>, vector<1x256xi32>
    %c0_i32_6 = arith.constant 0 : i32
    %21 = vector.broadcast %c0_i32_6 : i32 to vector<1x256xi32>
    %22 = arith.cmpi ne, %20, %21 : vector<1x256xi32>
    %c15_i32 = arith.constant 15 : i32
    %23 = vector.broadcast %c15_i32 : i32 to vector<1x256xi32>
    %24 = arith.cmpi ne, %20, %23 : vector<1x256xi32>
    %25 = vector.shape_cast %22 : vector<1x256xi1> to vector<1x256xi1>
    %26 = vector.broadcast %25 : vector<1x256xi1> to vector<8x256xi1>
    %27 = vector.shape_cast %24 : vector<1x256xi1> to vector<1x256xi1>
    %28 = vector.broadcast %27 : vector<1x256xi1> to vector<8x256xi1>
    %c0_7 = arith.constant 0 : index
    %c0_8 = arith.constant 0 : index
    %c0_9 = arith.constant 0 : index
    %29 = vector.load %arg1[%c0_7, %c0_8, %c0_9] : memref<1x8x290xf32, #tpu.memory_space<vmem>>, vector<1x8x256xf32>
    %30 = vector.shape_cast %29 : vector<1x8x256xf32> to vector<8x256xf32>
    %cst_10 = arith.constant 0.000000e+00 : f32
    %31 = vector.broadcast %cst_10 : f32 to vector<8x256xf32>
    %32 = arith.select %26, %30, %31 : vector<8x256xi1>, vector<8x256xf32>
    %c0_11 = arith.constant 0 : index
    %c0_12 = arith.constant 0 : index
    %c1 = arith.constant 1 : index
    %33 = vector.load %arg1[%c0_11, %c0_12, %c1] : memref<1x8x290xf32, #tpu.memory_space<vmem>>, vector<1x8x256xf32>
    %34 = vector.shape_cast %33 : vector<1x8x256xf32> to vector<8x256xf32>
    %c0_13 = arith.constant 0 : index
    %c0_14 = arith.constant 0 : index
    %c2 = arith.constant 2 : index
    %35 = vector.load %arg1[%c0_13, %c0_14, %c2] : memref<1x8x290xf32, #tpu.memory_space<vmem>>, vector<1x8x256xf32>
    %36 = vector.shape_cast %35 : vector<1x8x256xf32> to vector<8x256xf32>
    %cst_15 = arith.constant 0.000000e+00 : f32
    %37 = vector.broadcast %cst_15 : f32 to vector<8x256xf32>
    %38 = arith.select %28, %36, %37 : vector<8x256xi1>, vector<8x256xf32>
    %c0_16 = arith.constant 0 : index
    %c0_17 = arith.constant 0 : index
    %c16 = arith.constant 16 : index
    %39 = vector.load %arg1[%c0_16, %c0_17, %c16] : memref<1x8x290xf32, #tpu.memory_space<vmem>>, vector<1x8x256xf32>
    %40 = vector.shape_cast %39 : vector<1x8x256xf32> to vector<8x256xf32>
    %cst_18 = arith.constant 0.000000e+00 : f32
    %41 = vector.broadcast %cst_18 : f32 to vector<8x256xf32>
    %42 = arith.select %26, %40, %41 : vector<8x256xi1>, vector<8x256xf32>
    %c0_19 = arith.constant 0 : index
    %c0_20 = arith.constant 0 : index
    %c17 = arith.constant 17 : index
    %43 = vector.load %arg1[%c0_19, %c0_20, %c17] : memref<1x8x290xf32, #tpu.memory_space<vmem>>, vector<1x8x256xf32>
    %44 = vector.shape_cast %43 : vector<1x8x256xf32> to vector<8x256xf32>
    %c0_21 = arith.constant 0 : index
    %c0_22 = arith.constant 0 : index
    %c18 = arith.constant 18 : index
    %45 = vector.load %arg1[%c0_21, %c0_22, %c18] : memref<1x8x290xf32, #tpu.memory_space<vmem>>, vector<1x8x256xf32>
    %46 = vector.shape_cast %45 : vector<1x8x256xf32> to vector<8x256xf32>
    %cst_23 = arith.constant 0.000000e+00 : f32
    %47 = vector.broadcast %cst_23 : f32 to vector<8x256xf32>
    %48 = arith.select %28, %46, %47 : vector<8x256xi1>, vector<8x256xf32>
    %c0_24 = arith.constant 0 : index
    %c0_25 = arith.constant 0 : index
    %c32 = arith.constant 32 : index
    %49 = vector.load %arg1[%c0_24, %c0_25, %c32] : memref<1x8x290xf32, #tpu.memory_space<vmem>>, vector<1x8x256xf32>
    %50 = vector.shape_cast %49 : vector<1x8x256xf32> to vector<8x256xf32>
    %cst_26 = arith.constant 0.000000e+00 : f32
    %51 = vector.broadcast %cst_26 : f32 to vector<8x256xf32>
    %52 = arith.select %26, %50, %51 : vector<8x256xi1>, vector<8x256xf32>
    %c0_27 = arith.constant 0 : index
    %c0_28 = arith.constant 0 : index
    %c33 = arith.constant 33 : index
    %53 = vector.load %arg1[%c0_27, %c0_28, %c33] : memref<1x8x290xf32, #tpu.memory_space<vmem>>, vector<1x8x256xf32>
    %54 = vector.shape_cast %53 : vector<1x8x256xf32> to vector<8x256xf32>
    %c0_29 = arith.constant 0 : index
    %c0_30 = arith.constant 0 : index
    %c34 = arith.constant 34 : index
    %55 = vector.load %arg1[%c0_29, %c0_30, %c34] : memref<1x8x290xf32, #tpu.memory_space<vmem>>, vector<1x8x256xf32>
    %56 = vector.shape_cast %55 : vector<1x8x256xf32> to vector<8x256xf32>
    %cst_31 = arith.constant 0.000000e+00 : f32
    %57 = vector.broadcast %cst_31 : f32 to vector<8x256xf32>
    %58 = arith.select %28, %56, %57 : vector<8x256xi1>, vector<8x256xf32>
    %59 = tpu.concatenate %32, %34, %38, %42, %44, %48, %52, %54, %58 in 0 : vector<8x256xf32>, vector<8x256xf32>, vector<8x256xf32>, vector<8x256xf32>, vector<8x256xf32>, vector<8x256xf32>, vector<8x256xf32>, vector<8x256xf32>, vector<8x256xf32> -> vector<72x256xf32>
    %c0_32 = arith.constant 0 : index
    %c0_33 = arith.constant 0 : index
    %60 = vector.load %arg2[%c0_32, %c0_33] : memref<16x72xf32, #tpu.memory_space<vmem>>, vector<16x72xf32>
    %cst_34 = arith.constant dense<0.000000e+00> : vector<16x256xf32>
    %61 = tpu.matmul %60, %59, %cst_34 {dimension_numbers = #tpu.dot_dimension_numbers<[1], [0], [0], [1], [0, 0, 1, 1], [], []>} : vector<16x72xf32>, vector<72x256xf32>, vector<16x256xf32> -> vector<16x256xf32>
    %c0_35 = arith.constant 0 : index
    %c0_36 = arith.constant 0 : index
    %62 = vector.load %arg3[%c0_35, %c0_36] : memref<16x1xf32, #tpu.memory_space<vmem>>, vector<16x1xf32>
    %63 = vector.broadcast %62 : vector<16x1xf32> to vector<16x256xf32>
    %64 = arith.addf %61, %63 : vector<16x256xf32>
    %cst_37 = arith.constant 0.000000e+00 : f32
    %65 = vector.broadcast %cst_37 : f32 to vector<16x256xf32>
    %66 = arith.maximumf %64, %65 : vector<16x256xf32>
    %c0_38 = arith.constant 0 : index
    %c17_39 = arith.constant 17 : index
    %67 = vector.load %arg8[%c0_38, %c17_39] : memref<16x290xf32, #tpu.memory_space<vmem>>, vector<16x256xf32>
    tpu.vector_store %arg8[%c0_38, %c17_39], %66 {strides = array<i32>} : memref<16x290xf32, #tpu.memory_space<vmem>>, vector<16x256xf32>,
    %68 = vector.shape_cast %22 : vector<1x256xi1> to vector<1x256xi1>
    %69 = vector.broadcast %68 : vector<1x256xi1> to vector<16x256xi1>
    %70 = vector.shape_cast %24 : vector<1x256xi1> to vector<1x256xi1>
    %71 = vector.broadcast %70 : vector<1x256xi1> to vector<16x256xi1>
    %c0_40 = arith.constant 0 : index
    %c0_41 = arith.constant 0 : index
    %72 = vector.load %arg8[%c0_40, %c0_41] : memref<16x290xf32, #tpu.memory_space<vmem>>, vector<16x256xf32>
    %cst_42 = arith.constant 0.000000e+00 : f32
    %73 = vector.broadcast %cst_42 : f32 to vector<16x256xf32>
    %74 = arith.select %69, %72, %73 : vector<16x256xi1>, vector<16x256xf32>
    %c0_43 = arith.constant 0 : index
    %c1_44 = arith.constant 1 : index
    %75 = vector.load %arg8[%c0_43, %c1_44] : memref<16x290xf32, #tpu.memory_space<vmem>>, vector<16x256xf32>
    %c0_45 = arith.constant 0 : index
    %c2_46 = arith.constant 2 : index
    %76 = vector.load %arg8[%c0_45, %c2_46] : memref<16x290xf32, #tpu.memory_space<vmem>>, vector<16x256xf32>
    %cst_47 = arith.constant 0.000000e+00 : f32
    %77 = vector.broadcast %cst_47 : f32 to vector<16x256xf32>
    %78 = arith.select %71, %76, %77 : vector<16x256xi1>, vector<16x256xf32>
    %c0_48 = arith.constant 0 : index
    %c16_49 = arith.constant 16 : index
    %79 = vector.load %arg8[%c0_48, %c16_49] : memref<16x290xf32, #tpu.memory_space<vmem>>, vector<16x256xf32>
    %cst_50 = arith.constant 0.000000e+00 : f32
    %80 = vector.broadcast %cst_50 : f32 to vector<16x256xf32>
    %81 = arith.select %69, %79, %80 : vector<16x256xi1>, vector<16x256xf32>
    %c0_51 = arith.constant 0 : index
    %c17_52 = arith.constant 17 : index
    %82 = vector.load %arg8[%c0_51, %c17_52] : memref<16x290xf32, #tpu.memory_space<vmem>>, vector<16x256xf32>
    %c0_53 = arith.constant 0 : index
    %c18_54 = arith.constant 18 : index
    %83 = vector.load %arg8[%c0_53, %c18_54] : memref<16x290xf32, #tpu.memory_space<vmem>>, vector<16x256xf32>
    %cst_55 = arith.constant 0.000000e+00 : f32
    %84 = vector.broadcast %cst_55 : f32 to vector<16x256xf32>
    %85 = arith.select %71, %83, %84 : vector<16x256xi1>, vector<16x256xf32>
    %c0_56 = arith.constant 0 : index
    %c32_57 = arith.constant 32 : index
    %86 = vector.load %arg8[%c0_56, %c32_57] : memref<16x290xf32, #tpu.memory_space<vmem>>, vector<16x256xf32>
    %cst_58 = arith.constant 0.000000e+00 : f32
    %87 = vector.broadcast %cst_58 : f32 to vector<16x256xf32>
    %88 = arith.select %69, %86, %87 : vector<16x256xi1>, vector<16x256xf32>
    %c0_59 = arith.constant 0 : index
    %c33_60 = arith.constant 33 : index
    %89 = vector.load %arg8[%c0_59, %c33_60] : memref<16x290xf32, #tpu.memory_space<vmem>>, vector<16x256xf32>
    %c0_61 = arith.constant 0 : index
    %c34_62 = arith.constant 34 : index
    %90 = vector.load %arg8[%c0_61, %c34_62] : memref<16x290xf32, #tpu.memory_space<vmem>>, vector<16x256xf32>
    %cst_63 = arith.constant 0.000000e+00 : f32
    %91 = vector.broadcast %cst_63 : f32 to vector<16x256xf32>
    %92 = arith.select %71, %90, %91 : vector<16x256xi1>, vector<16x256xf32>
    %93 = tpu.concatenate %74, %75, %78, %81, %82, %85, %88, %89, %92 in 0 : vector<16x256xf32>, vector<16x256xf32>, vector<16x256xf32>, vector<16x256xf32>, vector<16x256xf32>, vector<16x256xf32>, vector<16x256xf32>, vector<16x256xf32>, vector<16x256xf32> -> vector<144x256xf32>
    %c0_64 = arith.constant 0 : index
    %c0_65 = arith.constant 0 : index
    %94 = vector.load %arg4[%c0_64, %c0_65] : memref<16x144xf32, #tpu.memory_space<vmem>>, vector<16x144xf32>
    %cst_66 = arith.constant dense<0.000000e+00> : vector<16x256xf32>
    %95 = tpu.matmul %94, %93, %cst_66 {dimension_numbers = #tpu.dot_dimension_numbers<[1], [0], [0], [1], [0, 0, 1, 1], [], []>} : vector<16x144xf32>, vector<144x256xf32>, vector<16x256xf32> -> vector<16x256xf32>
    %c0_67 = arith.constant 0 : index
    %c0_68 = arith.constant 0 : index
    %96 = vector.load %arg5[%c0_67, %c0_68] : memref<16x1xf32, #tpu.memory_space<vmem>>, vector<16x1xf32>
    %97 = vector.broadcast %96 : vector<16x1xf32> to vector<16x256xf32>
    %98 = arith.addf %95, %97 : vector<16x256xf32>
    %cst_69 = arith.constant 0.000000e+00 : f32
    %99 = vector.broadcast %cst_69 : f32 to vector<16x256xf32>
    %100 = arith.maximumf %98, %99 : vector<16x256xf32>
    %c0_70 = arith.constant 0 : index
    %c0_71 = arith.constant 0 : index
    %c0_72 = arith.constant 0 : index
    %101 = vector.load %arg7[%c0_70, %c0_71, %c0_72] : memref<1x16x256xf32, #tpu.memory_space<vmem>>, vector<1x16x256xf32>
    %102 = vector.shape_cast %101 : vector<1x16x256xf32> to vector<16x256xf32>
    %103 = vector.shape_cast %100 : vector<16x256xf32> to vector<1x16x256xf32>
    tpu.vector_store %arg7[%c0_70, %c0_71, %c0_72], %103 {strides = array<i32>} : memref<1x16x256xf32, #tpu.memory_space<vmem>>, vector<1x16x256xf32>,
    %104 = tpu.iota {dimensions = array<i32: 0>} : vector<16x8xi32>
    %105 = tpu.iota {dimensions = array<i32: 1>} : vector<16x8xi32>
    %c2_i32 = arith.constant 2 : i32
    %106 = vector.broadcast %c2_i32 : i32 to vector<16x8xi32>
    %107 = arith.muli %106, %105 : vector<16x8xi32>
    %108 = arith.cmpi eq, %104, %107 : vector<16x8xi32>
    %109 = arith.extui %108 : vector<16x8xi1> to vector<16x8xi32>
    %110 = arith.sitofp %109 : vector<16x8xi32> to vector<16x8xf32>
    %c2_i32_73 = arith.constant 2 : i32
    %111 = vector.broadcast %c2_i32_73 : i32 to vector<16x8xi32>
    %112 = arith.muli %111, %105 : vector<16x8xi32>
    %c1_i32_74 = arith.constant 1 : i32
    %113 = vector.broadcast %c1_i32_74 : i32 to vector<16x8xi32>
    %114 = arith.addi %112, %113 : vector<16x8xi32>
    %115 = arith.cmpi eq, %104, %114 : vector<16x8xi32>
    %116 = arith.extui %115 : vector<16x8xi1> to vector<16x8xi32>
    %117 = arith.sitofp %116 : vector<16x8xi32> to vector<16x8xf32>
    %118 = vector.extract_strided_slice %100 {offsets = [0, 0], sizes = [16, 16], strides = [1, 1]} : vector<16x256xf32> to vector<16x16xf32>
    %119 = vector.extract_strided_slice %100 {offsets = [0, 16], sizes = [16, 16], strides = [1, 1]} : vector<16x256xf32> to vector<16x16xf32>
    %120 = arith.maximumf %118, %119 : vector<16x16xf32>
    %cst_75 = arith.constant dense<0.000000e+00> : vector<16x8xf32>
    %121 = tpu.matmul %120, %110, %cst_75 {dimension_numbers = #tpu.dot_dimension_numbers<[1], [0], [0], [1], [0, 0, 1, 1], [], []>} : vector<16x16xf32>, vector<16x8xf32>, vector<16x8xf32> -> vector<16x8xf32>
    %cst_76 = arith.constant dense<0.000000e+00> : vector<16x8xf32>
    %122 = tpu.matmul %120, %117, %cst_76 {dimension_numbers = #tpu.dot_dimension_numbers<[1], [0], [0], [1], [0, 0, 1, 1], [], []>} : vector<16x16xf32>, vector<16x8xf32>, vector<16x8xf32> -> vector<16x8xf32>
    %123 = arith.maximumf %121, %122 : vector<16x8xf32>
    %124 = vector.extract_strided_slice %100 {offsets = [0, 32], sizes = [16, 16], strides = [1, 1]} : vector<16x256xf32> to vector<16x16xf32>
    %125 = vector.extract_strided_slice %100 {offsets = [0, 48], sizes = [16, 16], strides = [1, 1]} : vector<16x256xf32> to vector<16x16xf32>
    %126 = arith.maximumf %124, %125 : vector<16x16xf32>
    %cst_77 = arith.constant dense<0.000000e+00> : vector<16x8xf32>
    %127 = tpu.matmul %126, %110, %cst_77 {dimension_numbers = #tpu.dot_dimension_numbers<[1], [0], [0], [1], [0, 0, 1, 1], [], []>} : vector<16x16xf32>, vector<16x8xf32>, vector<16x8xf32> -> vector<16x8xf32>
    %cst_78 = arith.constant dense<0.000000e+00> : vector<16x8xf32>
    %128 = tpu.matmul %126, %117, %cst_78 {dimension_numbers = #tpu.dot_dimension_numbers<[1], [0], [0], [1], [0, 0, 1, 1], [], []>} : vector<16x16xf32>, vector<16x8xf32>, vector<16x8xf32> -> vector<16x8xf32>
    %129 = arith.maximumf %127, %128 : vector<16x8xf32>
    %130 = vector.extract_strided_slice %100 {offsets = [0, 64], sizes = [16, 16], strides = [1, 1]} : vector<16x256xf32> to vector<16x16xf32>
    %131 = vector.extract_strided_slice %100 {offsets = [0, 80], sizes = [16, 16], strides = [1, 1]} : vector<16x256xf32> to vector<16x16xf32>
    %132 = arith.maximumf %130, %131 : vector<16x16xf32>
    %cst_79 = arith.constant dense<0.000000e+00> : vector<16x8xf32>
    %133 = tpu.matmul %132, %110, %cst_79 {dimension_numbers = #tpu.dot_dimension_numbers<[1], [0], [0], [1], [0, 0, 1, 1], [], []>} : vector<16x16xf32>, vector<16x8xf32>, vector<16x8xf32> -> vector<16x8xf32>
    %cst_80 = arith.constant dense<0.000000e+00> : vector<16x8xf32>
    %134 = tpu.matmul %132, %117, %cst_80 {dimension_numbers = #tpu.dot_dimension_numbers<[1], [0], [0], [1], [0, 0, 1, 1], [], []>} : vector<16x16xf32>, vector<16x8xf32>, vector<16x8xf32> -> vector<16x8xf32>
    %135 = arith.maximumf %133, %134 : vector<16x8xf32>
    %136 = vector.extract_strided_slice %100 {offsets = [0, 96], sizes = [16, 16], strides = [1, 1]} : vector<16x256xf32> to vector<16x16xf32>
    %137 = vector.extract_strided_slice %100 {offsets = [0, 112], sizes = [16, 16], strides = [1, 1]} : vector<16x256xf32> to vector<16x16xf32>
    %138 = arith.maximumf %136, %137 : vector<16x16xf32>
    %cst_81 = arith.constant dense<0.000000e+00> : vector<16x8xf32>
    %139 = tpu.matmul %138, %110, %cst_81 {dimension_numbers = #tpu.dot_dimension_numbers<[1], [0], [0], [1], [0, 0, 1, 1], [], []>} : vector<16x16xf32>, vector<16x8xf32>, vector<16x8xf32> -> vector<16x8xf32>
    %cst_82 = arith.constant dense<0.000000e+00> : vector<16x8xf32>
    %140 = tpu.matmul %138, %117, %cst_82 {dimension_numbers = #tpu.dot_dimension_numbers<[1], [0], [0], [1], [0, 0, 1, 1], [], []>} : vector<16x16xf32>, vector<16x8xf32>, vector<16x8xf32> -> vector<16x8xf32>
    %141 = arith.maximumf %139, %140 : vector<16x8xf32>
    %142 = vector.extract_strided_slice %100 {offsets = [0, 128], sizes = [16, 16], strides = [1, 1]} : vector<16x256xf32> to vector<16x16xf32>
    %143 = vector.extract_strided_slice %100 {offsets = [0, 144], sizes = [16, 16], strides = [1, 1]} : vector<16x256xf32> to vector<16x16xf32>
    %144 = arith.maximumf %142, %143 : vector<16x16xf32>
    %cst_83 = arith.constant dense<0.000000e+00> : vector<16x8xf32>
    %145 = tpu.matmul %144, %110, %cst_83 {dimension_numbers = #tpu.dot_dimension_numbers<[1], [0], [0], [1], [0, 0, 1, 1], [], []>} : vector<16x16xf32>, vector<16x8xf32>, vector<16x8xf32> -> vector<16x8xf32>
    %cst_84 = arith.constant dense<0.000000e+00> : vector<16x8xf32>
    %146 = tpu.matmul %144, %117, %cst_84 {dimension_numbers = #tpu.dot_dimension_numbers<[1], [0], [0], [1], [0, 0, 1, 1], [], []>} : vector<16x16xf32>, vector<16x8xf32>, vector<16x8xf32> -> vector<16x8xf32>
    %147 = arith.maximumf %145, %146 : vector<16x8xf32>
    %148 = vector.extract_strided_slice %100 {offsets = [0, 160], sizes = [16, 16], strides = [1, 1]} : vector<16x256xf32> to vector<16x16xf32>
    %149 = vector.extract_strided_slice %100 {offsets = [0, 176], sizes = [16, 16], strides = [1, 1]} : vector<16x256xf32> to vector<16x16xf32>
    %150 = arith.maximumf %148, %149 : vector<16x16xf32>
    %cst_85 = arith.constant dense<0.000000e+00> : vector<16x8xf32>
    %151 = tpu.matmul %150, %110, %cst_85 {dimension_numbers = #tpu.dot_dimension_numbers<[1], [0], [0], [1], [0, 0, 1, 1], [], []>} : vector<16x16xf32>, vector<16x8xf32>, vector<16x8xf32> -> vector<16x8xf32>
    %cst_86 = arith.constant dense<0.000000e+00> : vector<16x8xf32>
    %152 = tpu.matmul %150, %117, %cst_86 {dimension_numbers = #tpu.dot_dimension_numbers<[1], [0], [0], [1], [0, 0, 1, 1], [], []>} : vector<16x16xf32>, vector<16x8xf32>, vector<16x8xf32> -> vector<16x8xf32>
    %153 = arith.maximumf %151, %152 : vector<16x8xf32>
    %154 = vector.extract_strided_slice %100 {offsets = [0, 192], sizes = [16, 16], strides = [1, 1]} : vector<16x256xf32> to vector<16x16xf32>
    %155 = vector.extract_strided_slice %100 {offsets = [0, 208], sizes = [16, 16], strides = [1, 1]} : vector<16x256xf32> to vector<16x16xf32>
    %156 = arith.maximumf %154, %155 : vector<16x16xf32>
    %cst_87 = arith.constant dense<0.000000e+00> : vector<16x8xf32>
    %157 = tpu.matmul %156, %110, %cst_87 {dimension_numbers = #tpu.dot_dimension_numbers<[1], [0], [0], [1], [0, 0, 1, 1], [], []>} : vector<16x16xf32>, vector<16x8xf32>, vector<16x8xf32> -> vector<16x8xf32>
    %cst_88 = arith.constant dense<0.000000e+00> : vector<16x8xf32>
    %158 = tpu.matmul %156, %117, %cst_88 {dimension_numbers = #tpu.dot_dimension_numbers<[1], [0], [0], [1], [0, 0, 1, 1], [], []>} : vector<16x16xf32>, vector<16x8xf32>, vector<16x8xf32> -> vector<16x8xf32>
    %159 = arith.maximumf %157, %158 : vector<16x8xf32>
    %160 = vector.extract_strided_slice %100 {offsets = [0, 224], sizes = [16, 16], strides = [1, 1]} : vector<16x256xf32> to vector<16x16xf32>
    %161 = vector.extract_strided_slice %100 {offsets = [0, 240], sizes = [16, 16], strides = [1, 1]} : vector<16x256xf32> to vector<16x16xf32>
    %162 = arith.maximumf %160, %161 : vector<16x16xf32>
    %cst_89 = arith.constant dense<0.000000e+00> : vector<16x8xf32>
    %163 = tpu.matmul %162, %110, %cst_89 {dimension_numbers = #tpu.dot_dimension_numbers<[1], [0], [0], [1], [0, 0, 1, 1], [], []>} : vector<16x16xf32>, vector<16x8xf32>, vector<16x8xf32> -> vector<16x8xf32>
    %cst_90 = arith.constant dense<0.000000e+00> : vector<16x8xf32>
    %164 = tpu.matmul %162, %117, %cst_90 {dimension_numbers = #tpu.dot_dimension_numbers<[1], [0], [0], [1], [0, 0, 1, 1], [], []>} : vector<16x16xf32>, vector<16x8xf32>, vector<16x8xf32> -> vector<16x8xf32>
    %165 = arith.maximumf %163, %164 : vector<16x8xf32>
    %166 = tpu.concatenate %123, %129, %135, %141, %147, %153, %159, %165 in 1 : vector<16x8xf32>, vector<16x8xf32>, vector<16x8xf32>, vector<16x8xf32>, vector<16x8xf32>, vector<16x8xf32>, vector<16x8xf32>, vector<16x8xf32> -> vector<16x64xf32>
    %c0_91 = arith.constant 0 : index
    %c0_92 = arith.constant 0 : index
    %c0_93 = arith.constant 0 : index
    %167 = vector.load %arg6[%c0_91, %c0_92, %c0_93] : memref<1x16x64xf32, #tpu.memory_space<vmem>>, vector<1x16x64xf32>
    %168 = vector.shape_cast %167 : vector<1x16x64xf32> to vector<16x64xf32>
    %169 = vector.shape_cast %166 : vector<16x64xf32> to vector<1x16x64xf32>
    tpu.vector_store %arg6[%c0_91, %c0_92, %c0_93], %169 {strides = array<i32>} : memref<1x16x64xf32, #tpu.memory_space<vmem>>, vector<1x16x64xf32>,
    return
  }
  func.func @transform_0(%arg0: i32) -> (i32, i32, i32) {
    %c0_i32 = arith.constant 0 : i32
    %c0_i32_0 = arith.constant 0 : i32
    %c0_i32_1 = arith.constant 0 : i32
    return %arg0, %c0_i32, %c0_i32_0 : i32, i32, i32
  }
  func.func @transform_1(%arg0: i32) -> (i32, i32) {
    %c0_i32 = arith.constant 0 : i32
    %c0_i32_0 = arith.constant 0 : i32
    %c0_i32_1 = arith.constant 0 : i32
    return %c0_i32, %c0_i32_0 : i32, i32
  }
  func.func @transform_2(%arg0: i32) -> (i32, i32) {
    %c0_i32 = arith.constant 0 : i32
    %c0_i32_0 = arith.constant 0 : i32
    %c0_i32_1 = arith.constant 0 : i32
    return %c0_i32, %c0_i32_0 : i32, i32
  }
  func.func @transform_3(%arg0: i32) -> (i32, i32) {
    %c0_i32 = arith.constant 0 : i32
    %c0_i32_0 = arith.constant 0 : i32
    %c0_i32_1 = arith.constant 0 : i32
    return %c0_i32, %c0_i32_0 : i32, i32
  }
  func.func @transform_4(%arg0: i32) -> (i32, i32) {
    %c0_i32 = arith.constant 0 : i32
    %c0_i32_0 = arith.constant 0 : i32
    %c0_i32_1 = arith.constant 0 : i32
    return %c0_i32, %c0_i32_0 : i32, i32
  }
  func.func @transform_5(%arg0: i32) -> (i32, i32, i32) {
    %c0_i32 = arith.constant 0 : i32
    %c0_i32_0 = arith.constant 0 : i32
    %c0_i32_1 = arith.constant 0 : i32
    return %arg0, %c0_i32, %c0_i32_0 : i32, i32, i32
  }
  func.func @transform_6(%arg0: i32) -> (i32, i32, i32) {
    %c0_i32 = arith.constant 0 : i32
    %c0_i32_0 = arith.constant 0 : i32
    %c0_i32_1 = arith.constant 0 : i32
    return %arg0, %c0_i32, %c0_i32_0 : i32, i32, i32
  }
}

</mosaic_0001>

<llo_original>
// kernel: tpu_custom_call.1
$region0: #{tpu_custom_call.1}
  #allocation0 [shape = 'u32[]', space=smem, size = 0x4, offset = 0x4, fixed_abs, tag = 'smem constant byte address 0x4 - core index']
  #allocation1 [shape = 'u32[72,128]{1,0:T(1,128)}', space=vmem, size = 0x9000, scoped, tag = 'internal scratch']
  #allocation2 [shape = 'f32[16,290]{1,0:T(8,128)}', space=vmem, size = 0x6000, scoped, tag = 'scratch operand']
  %s0 = inlined_call_operand.hbm [shape: f32[2,8,290], index: 0, kind: input, shape index: {}]
  %s1 = inlined_call_operand.hbm [shape: f32[16,72], index: 1, kind: input, shape index: {}]
  %s2 = inlined_call_operand.vmem [shape: f32[16,1], index: 2, kind: input, shape index: {}]
  %s3 = inlined_call_operand.vmem [shape: f32[16,144], index: 3, kind: input, shape index: {}]
  %s4 = inlined_call_operand.vmem [shape: f32[16,1], index: 4, kind: input, shape index: {}]
  %s5 = inlined_call_operand.hbm [shape: f32[2,16,64], index: 5, kind: output, shape index: {0}]
  %s6 = inlined_call_operand.hbm [shape: f32[2,16,256], index: 6, kind: output, shape index: {1}]
  %7 = xla_tuple %s5, %s6
  %s8 = sld [smem:[#allocation0]]
  $region69: #{tpu_custom_call.1} parent=0
    _
  %s10 = ssub.s32 1, %s8
  %s11 = scalar_select 0, %s10, %s8
  $region1: #{tpu_custom_call.1} parent=0
    #allocation3 [shape = 'u8[24576]{0}', space=vmem, size = 0x6000, scoped, tag = 'input window, operand 0']
    #allocation4 [shape = 's32[2]{0}', space=sflag, size = 0x8, scoped, tag = 'scoped memory for tpu_custom_call.1']
    #allocation5 [shape = 's32[2]{0}', space=sflag, size = 0x8, scoped, tag = 'scoped memory for tpu_custom_call.1']
    #allocation6 [shape = 'u8[8192]{0}', space=vmem, size = 0x2000, scoped, tag = 'input window, operand 1, single buffered']
    #allocation7 [shape = 's32[1]{0}', space=sflag, size = 0x4, scoped, tag = 'scoped memory for tpu_custom_call.1']
    #allocation8 [shape = 'u8[16384]{0}', space=vmem, size = 0x4000, scoped, tag = 'output window, operand 0']
    #allocation9 [shape = 'u8[32768]{0}', space=vmem, size = 0x8000, scoped, tag = 'output window, operand 1']
    #allocation10 [shape = 's32[2]{0}', space=sflag, size = 0x8, scoped, tag = 'scoped memory for tpu_custom_call.1']
    %12 = vsyncpa [#allocation4], 0
    %s13 = scalar_lea.sflag [#allocation4], 1
    %14 = vsyncpa %s13, 0
    %15 = vsyncpa [#allocation7], 0
    %16 = vsyncpa [#allocation5], 0
    %s17 = scalar_lea.sflag [#allocation5], 1
    %18 = vsyncpa %s17, 0
    %19 = vsyncpa [#allocation10], 0
    %s20 = scalar_lea.sflag [#allocation10], 1
    %21 = vsyncpa %s20, 0
    loop: start=0, step=1, limit=4
    $region2: #{tpu_custom_call.1} parent=1 // loop_pre_header
      _
    $region3: #{tpu_custom_call.1} parent=1 // loop_header
      %s23 = sphi 0, %s27
      %p24 = scmp.ge.s32.totalorder %s23, 4
      %s33 = sphi 0, %s35
      %s36 = sphi 0, %s33
      %s37 = sphi 0, %s36
      %s53 = sphi 0, %s37
      %s57 = sphi 0, %s57
      %s59 = sphi 0, %s57
      %s60 = sphi 0, %s59
      %s74 = sphi 0, %s60
      %s78 = sphi 0, %s78
      %s80 = sphi 0, %s78
      %s81 = sphi 0, %s80
      %s95 = sphi 0, %s81
      %s99 = sphi 0, %s99
      %s101 = sphi 0, %s99
      %s102 = sphi 0, %s101
      %s116 = sphi 0, %s102
      %s120 = sphi 0, %s120
      %s122 = sphi 0, %s120
      %s123 = sphi 0, %s122
      %s137 = sphi 0, %s123
      %s143 = sphi 0, %s145
      %s146 = sphi 0, %s143
      %s147 = sphi 0, %s146
      %s163 = sphi 0, %s147
      %s169 = sphi 0, %s171
      %s172 = sphi 0, %s169
      %s173 = sphi 0, %s172
      %s189 = sphi 0, %s173
    $region4: #{tpu_custom_call.1} parent=1 // loop_header_branch
      %26 = sbr.rel (%p24) target = $region8
    $region5: #{tpu_custom_call.1} parent=1 // loop_body
      %s28 = ssub.s32 %s23, 1
      %s29 = ssub.s32 %s23, 2
      %s30 = sadd.s32 %s23, 1
      %s31 = ssub.s32 %s23, %s30
      %p32 = scmp.eq.s32.totalorder %s31, 0
      %s34 = sadd.s32 %s33, 1
      %s35 = scalar_select %p32, %s33, %s34
      %p38 = pneg %p32
      %p39 = scmp.eq.s32.totalorder %s23, 1
      %p40 = por %p38, %p39
      %p41 = scmp.ne.s32.totalorder %s33, %s36
      %p42 = scmp.eq.s32.totalorder %s23, 0
      %p43 = por %p41, %p42
      %p44 = scmp.ne.s32.totalorder %s33, %s36
      %p45 = scmp.eq.s32.totalorder %s28, 1
      %p46 = por %p44, %p45
      %p47 = scmp.ne.s32.totalorder %s36, %s37
      %p48 = scmp.eq.s32.totalorder %s28, 0
      %p49 = por %p47, %p48
      %p50 = scmp.ne.s32.totalorder %s36, %s37
      %p51 = scmp.eq.s32.totalorder %s29, 1
      %p52 = por %p50, %p51
      %p54 = scmp.ne.s32.totalorder %s37, %s53
      %p55 = scmp.eq.s32.totalorder %s29, 0
      %p56 = por %p54, %p55
      %s58 = sadd.s32 %s57, 1
      %p61 = scmp.eq.s32.totalorder %s23, 1
      %p62 = scmp.ne.s32.totalorder %s57, %s59
      %p63 = scmp.eq.s32.totalorder %s23, 0
      %p64 = por %p62, %p63
      %p65 = scmp.ne.s32.totalorder %s57, %s59
      %p66 = scmp.eq.s32.totalorder %s28, 1
      %p67 = por %p65, %p66
      %p68 = scmp.ne.s32.totalorder %s59, %s60
      %p69 = scmp.eq.s32.totalorder %s28, 0
      %p70 = por %p68, %p69
      %p71 = scmp.ne.s32.totalorder %s59, %s60
      %p72 = scmp.eq.s32.totalorder %s29, 1
      %p73 = por %p71, %p72
      %p75 = scmp.ne.s32.totalorder %s60, %s74
      %p76 = scmp.eq.s32.totalorder %s29, 0
      %p77 = por %p75, %p76
      %s79 = sadd.s32 %s78, 1
      %p82 = scmp.eq.s32.totalorder %s23, 1
      %p83 = scmp.ne.s32.totalorder %s78, %s80
      %p84 = scmp.eq.s32.totalorder %s23, 0
      %p85 = por %p83, %p84
      %p86 = scmp.ne.s32.totalorder %s78, %s80
      %p87 = scmp.eq.s32.totalorder %s28, 1
      %p88 = por %p86, %p87
      %p89 = scmp.ne.s32.totalorder %s80, %s81
      %p90 = scmp.eq.s32.totalorder %s28, 0
      %p91 = por %p89, %p90
      %p92 = scmp.ne.s32.totalorder %s80, %s81
      %p93 = scmp.eq.s32.totalorder %s29, 1
      %p94 = por %p92, %p93
      %p96 = scmp.ne.s32.totalorder %s81, %s95
      %p97 = scmp.eq.s32.totalorder %s29, 0
      %p98 = por %p96, %p97
      %s100 = sadd.s32 %s99, 1
      %p103 = scmp.eq.s32.totalorder %s23, 1
      %p104 = scmp.ne.s32.totalorder %s99, %s101
      %p105 = scmp.eq.s32.totalorder %s23, 0
      %p106 = por %p104, %p105
      %p107 = scmp.ne.s32.totalorder %s99, %s101
      %p108 = scmp.eq.s32.totalorder %s28, 1
      %p109 = por %p107, %p108
      %p110 = scmp.ne.s32.totalorder %s101, %s102
      %p111 = scmp.eq.s32.totalorder %s28, 0
      %p112 = por %p110, %p111
      %p113 = scmp.ne.s32.totalorder %s101, %s102
      %p114 = scmp.eq.s32.totalorder %s29, 1
      %p115 = por %p113, %p114
      %p117 = scmp.ne.s32.totalorder %s102, %s116
      %p118 = scmp.eq.s32.totalorder %s29, 0
      %p119 = por %p117, %p118
      %s121 = sadd.s32 %s120, 1
      %p124 = scmp.eq.s32.totalorder %s23, 1
      %p125 = scmp.ne.s32.totalorder %s120, %s122
      %p126 = scmp.eq.s32.totalorder %s23, 0
      %p127 = por %p125, %p126
      %p128 = scmp.ne.s32.totalorder %s120, %s122
      %p129 = scmp.eq.s32.totalorder %s28, 1
      %p130 = por %p128, %p129
      %p131 = scmp.ne.s32.totalorder %s122, %s123
      %p132 = scmp.eq.s32.totalorder %s28, 0
      %p133 = por %p131, %p132
      %p134 = scmp.ne.s32.totalorder %s122, %s123
      %p135 = scmp.eq.s32.totalorder %s29, 1
      %p136 = por %p134, %p135
      %p138 = scmp.ne.s32.totalorder %s123, %s137
      %p139 = scmp.eq.s32.totalorder %s29, 0
      %p140 = por %p138, %p139
      %s141 = ssub.s32 %s23, %s30
      %p142 = scmp.eq.s32.totalorder %s141, 0
      %s144 = sadd.s32 %s143, 1
      %s145 = scalar_select %p142, %s143, %s144
      %p148 = pneg %p142
      %p149 = scmp.eq.s32.totalorder %s23, 1
      %p150 = por %p148, %p149
      %p151 = scmp.ne.s32.totalorder %s143, %s146
      %p152 = scmp.eq.s32.totalorder %s23, 0
      %p153 = por %p151, %p152
      %p154 = scmp.ne.s32.totalorder %s143, %s146
      %p155 = scmp.eq.s32.totalorder %s28, 1
      %p156 = por %p154, %p155
      %p157 = scmp.ne.s32.totalorder %s146, %s147
      %p158 = scmp.eq.s32.totalorder %s28, 0
      %p159 = por %p157, %p158
      %p160 = scmp.ne.s32.totalorder %s146, %s147
      %p161 = scmp.eq.s32.totalorder %s29, 1
      %p162 = por %p160, %p161
      %p164 = scmp.ne.s32.totalorder %s147, %s163
      %p165 = scmp.eq.s32.totalorder %s29, 0
      %p166 = por %p164, %p165
      %s167 = ssub.s32 %s23, %s30
      %p168 = scmp.eq.s32.totalorder %s167, 0
      %s170 = sadd.s32 %s169, 1
      %s171 = scalar_select %p168, %s169, %s170
      %p174 = pneg %p168
      %p175 = scmp.eq.s32.totalorder %s23, 1
      %p176 = por %p174, %p175
      %p177 = scmp.ne.s32.totalorder %s169, %s172
      %p178 = scmp.eq.s32.totalorder %s23, 0
      %p179 = por %p177, %p178
      %p180 = scmp.ne.s32.totalorder %s169, %s172
      %p181 = scmp.eq.s32.totalorder %s28, 1
      %p182 = por %p180, %p181
      %p183 = scmp.ne.s32.totalorder %s172, %s173
      %p184 = scmp.eq.s32.totalorder %s28, 0
      %p185 = por %p183, %p184
      %p186 = scmp.ne.s32.totalorder %s172, %s173
      %p187 = scmp.eq.s32.totalorder %s29, 1
      %p188 = por %p186, %p187
      %p190 = scmp.ne.s32.totalorder %s173, %s189
      %p191 = scmp.eq.s32.totalorder %s29, 0
      %p192 = por %p190, %p191
      %p193 = scmp.le.s32.totalorder 1, %s23
      %p194 = scmp.lt.s32.totalorder %s23, 3
      %p195 = pnand %p193, %p194
      %p196 = pneg %p195
      // Predicated region
      $region9: #{tpu_custom_call.1} parent=5 // pred_check
        _
      $region10: #{tpu_custom_call.1} parent=5 // pred_check_branch
        %198 = sbr.rel (%p195) target = $region12
      $region11: #{tpu_custom_call.1} parent=5 // pred_region
        %s199 = ssub.s32 %s23, 1
        // Predicated region
        $region13: #{tpu_custom_call.1} parent=11 // pred_check
          %p200 = pneg %p70
        $region14: #{tpu_custom_call.1} parent=11 // pred_check_branch
          %202 = sbr.rel (%p200) target = $region16
        $region15: #{tpu_custom_call.1} parent=11 // pred_region
          %204 = vsyncadd [#allocation7], 0
          %s205 = sshll.u32 %s1, 4
          %s206 = int_to_ptr.hbm [resolvable:$true] %s205
          %s207 = sshll.u32 [#allocation6], 4
          %s208 = int_to_ptr.vmem [resolvable:$true] %s207
          %213 = dma.hbm_to_vmem [thread:$0]  %s206, 256, %s208, [#allocation7], 128, 128, 8
        $region16: #{tpu_custom_call.1} parent=11 // pred_fallthru
          _
        // Predicated region
        $region17: #{tpu_custom_call.1} parent=11 // pred_check
          %p214 = pneg %p91
        $region18: #{tpu_custom_call.1} parent=11 // pred_check_branch
          %216 = sbr.rel (%p214) target = $region20
        $region19: #{tpu_custom_call.1} parent=11 // pred_region
          _
        $region20: #{tpu_custom_call.1} parent=11 // pred_fallthru
          _
        // Predicated region
        $region21: #{tpu_custom_call.1} parent=11 // pred_check
          %p217 = pneg %p112
        $region22: #{tpu_custom_call.1} parent=11 // pred_check_branch
          %219 = sbr.rel (%p217) target = $region24
        $region23: #{tpu_custom_call.1} parent=11 // pred_region
          _
        $region24: #{tpu_custom_call.1} parent=11 // pred_fallthru
          _
        // Predicated region
        $region25: #{tpu_custom_call.1} parent=11 // pred_check
          %p220 = pneg %p133
        $region26: #{tpu_custom_call.1} parent=11 // pred_check_branch
          %222 = sbr.rel (%p220) target = $region28
        $region27: #{tpu_custom_call.1} parent=11 // pred_region
          _
        $region28: #{tpu_custom_call.1} parent=11 // pred_fallthru
          _
      $region12: #{tpu_custom_call.1} parent=5 // pred_fallthru
        _
      %p223 = scmp.lt.s32.totalorder %s23, 2
      // Predicated region
      $region29: #{tpu_custom_call.1} parent=5 // pred_check
        %p224 = pneg %p223
      $region30: #{tpu_custom_call.1} parent=5 // pred_check_branch
        %226 = sbr.rel (%p224) target = $region32
      $region31: #{tpu_custom_call.1} parent=5 // pred_region
        // Predicated region
        $region33: #{tpu_custom_call.1} parent=31 // pred_check
          %p227 = pneg %p43
        $region34: #{tpu_custom_call.1} parent=31 // pred_check_branch
          %229 = sbr.rel (%p227) target = $region36
        $region35: #{tpu_custom_call.1} parent=31 // pred_region
          %s230 = sand.u32 %s33, 1
          %s231 = scalar_lea.sflag [#allocation4], %s230
          %s232 = sand.u32 %s33, 1
          %s233 = smul.addr %s232, 24
          %s234 = scalar_lea.vmem [#allocation3], %s233
          %236 = vsyncadd %s231, 0
          %s237 = smul.addr %s23, 3
          %s238 = smul.addr %s237, 8
          %s239 = scalar_lea.hbm %s0, %s238
          %s241 = sshll.u32 %s239, 4
          %s242 = int_to_ptr.hbm [resolvable:$true] %s241
          %s243 = sshll.u32 %s234, 4
          %s244 = int_to_ptr.vmem [resolvable:$true] %s243
          %246 = dma.hbm_to_vmem [thread:$0]  %s242, 384, %s244, %s231
        $region36: #{tpu_custom_call.1} parent=31 // pred_fallthru
          _
      $region32: #{tpu_custom_call.1} parent=5 // pred_fallthru
        _
      %p247 = scmp.le.s32.totalorder 1, %s23
      %p248 = scmp.lt.s32.totalorder %s23, 3
      %p249 = pnand %p247, %p248
      %p250 = pneg %p249
      // Predicated region
      $region37: #{tpu_custom_call.1} parent=5 // pred_check
        _
      $region38: #{tpu_custom_call.1} parent=5 // pred_check_branch
        %252 = sbr.rel (%p249) target = $region40
      $region39: #{tpu_custom_call.1} parent=5 // pred_region
        %s253 = ssub.s32 %s23, 1
        %s254 = sand.u32 %s36, 1
        %s255 = scalar_lea.sflag [#allocation4], %s254
        %s256 = sand.u32 %s36, 1
        %s257 = smul.addr %s256, 24
        %s258 = scalar_lea.vmem [#allocation3], %s257
        // Predicated region
        $region41: #{tpu_custom_call.1} parent=39 // pred_check
          %p259 = pneg %p49
        $region42: #{tpu_custom_call.1} parent=39 // pred_check_branch
          %261 = sbr.rel (%p259) target = $region44
        $region43: #{tpu_custom_call.1} parent=39 // pred_region
          %263 = dma.done %s255, 384
        $region44: #{tpu_custom_call.1} parent=39 // pred_fallthru
          _
        // Predicated region
        $region45: #{tpu_custom_call.1} parent=39 // pred_check
          %p264 = pneg %p70
        $region46: #{tpu_custom_call.1} parent=39 // pred_check_branch
          %266 = sbr.rel (%p264) target = $region48
        $region47: #{tpu_custom_call.1} parent=39 // pred_region
          %268 = dma.done [#allocation7], 256
        $region48: #{tpu_custom_call.1} parent=39 // pred_fallthru
          _
        %s269 = sand.u32 %s36, 1
        %s270 = scalar_lea.sflag [#allocation4], %s269
        %s271 = sand.u32 %s36, 1
        %s272 = smul.addr %s271, 24
        %s273 = scalar_lea.vmem [#allocation3], %s272
        %p274 = pneg %p49
        %p275 = pneg %p46
        %p276 = pneg %p70
        %p277 = pneg %p67
        %p278 = pneg %p91
        %p279 = pneg %p88
        %p280 = pneg %p112
        %p281 = pneg %p109
        %p282 = pneg %p133
        %p283 = pneg %p130
        %p284 = pneg %p159
        %p285 = pneg %p156
        %s286 = sand.u32 %s146, 1
        %s287 = scalar_lea.sflag [#allocation5], %s286
        %s288 = sand.u32 %s146, 1
        %s289 = smul.addr %s288, 16
        %s290 = scalar_lea.vmem [#allocation8], %s289
        %p291 = pneg %p185
        %p292 = pneg %p182
        %s293 = sand.u32 %s172, 1
        %s294 = scalar_lea.sflag [#allocation10], %s293
        %s295 = sand.u32 %s172, 1
        %s296 = smul.addr %s295, 32
        %s297 = scalar_lea.vmem [#allocation9], %s296
        %vm298 = vcmask 138240
        %299 = vst.msk [vmem:[#allocation2] sm:$0xff] %vm298, 0.0
        %300 = vst.msk [vmem:[#allocation2 + $0x18] sm:$0xff] %vm298, 0.0
        %vm301 = vcmask 277640
        %302 = vst.msk [vmem:[#allocation2 + $0x10] sm:$0xff] %vm301, 0.0
        %303 = vst.msk [vmem:[#allocation2 + $0x28] sm:$0xff] %vm301, 0.0
        %v304 = vlaneseq
        %v305 = vand.u32 %v304, 127
        %v306 = vadd.s32 %v305, 128
        %vm307 = vcmp.lt.s32.totalorder %v305, 0
        %v308 = vsub.s32 0, %v305
        %v309 = vsel %vm307, %v308, %v305
        %v310 = vshrl.u32 %v309, 4
        %v311 = vand.u32 %v309, 15
        %v312 = vsub.s32 0, %v311
        %v313 = vsel %vm307, %v312, %v311
        %vm314 = vcmp.lt.s32.totalorder %v306, 0
        %v315 = vsub.s32 0, %v306
        %v316 = vsel %vm314, %v315, %v306
        %v317 = vshrl.u32 %v316, 4
        %v318 = vand.u32 %v316, 15
        %v319 = vsub.s32 0, %v318
        %v320 = vsel %vm314, %v319, %v318
        %vm321 = vcmp.ne.s32.totalorder %v313, 0
        %vm322 = vcmp.ne.s32.totalorder %v320, 0
        %vm323 = vcmp.lt.s32.totalorder %v313, 0
        %vm324 = vcmp.lt.s32.totalorder %v320, 0
        %vm325 = vmand %vm323, %vm321
        %vm326 = vmand %vm324, %vm322
        %v327 = vadd.s32 %v313, 16
        %v328 = vadd.s32 %v320, 16
        %v329 = vsel %vm325, %v327, %v313
        %v330 = vsel %vm326, %v328, %v320
        %vm331 = vcmp.ne.s32.totalorder %v329, 0
        %vm332 = vcmp.ne.s32.totalorder %v330, 0
        %vm333 = vcmp.ne.s32.totalorder %v329, 15
        %vm334 = vcmp.ne.s32.totalorder %v330, 15
        %v335 = vsel %vm331, 1, 0
        %v336 = vsel %vm332, 1, 0
        %vm337 = vcmp.eq.s32.totalorder %v335, 1
        %vm338 = vcmp.eq.s32.totalorder %v336, 1
        %v339 = vsel %vm333, 1, 0
        %v340 = vsel %vm334, 1, 0
        %vm341 = vcmp.eq.s32.totalorder %v339, 1
        %vm342 = vcmp.eq.s32.totalorder %v340, 1
        %v343 = vld [vmem:[%s258] sm:$0xff]
        %v344 = vld [vmem:[%s258 + $0x8] sm:$0xff]
        %v345 = vsel %vm337, %v343, 0.0
        %v346 = vsel %vm338, %v344, 0.0
        %v347 = vld [vmem:[%s258 + $0x10] sm:$0xff]
        %351 = vrot.lane.b32.xlu0 %v343, 126
        %v352 = vpop.permute.xlu0 %351
        %353 = vrot.lane.b32.xlu0 %v344, 126
        %v354 = vpop.permute.xlu0 %353
        %355 = vrot.lane.b32.xlu0 %v347, 126
        %v356 = vpop.permute.xlu0 %355
        %vm357 = vcmask 1031168
        %v358 = vsel %vm357, %v352, %v354
        %v359 = vsel %vm357, %v354, %v356
        %v362 = vsel %vm341, %v358, 0.0
        %v363 = vsel %vm342, %v359, 0.0
        %364 = vrot.lane.b32.xlu0 %v343, 112
        %v365 = vpop.permute.xlu0 %364
        %366 = vrot.lane.b32.xlu0 %v344, 112
        %v367 = vpop.permute.xlu0 %366
        %368 = vrot.lane.b32.xlu0 %v347, 112
        %v369 = vpop.permute.xlu0 %368
        %vm370 = vcmask 916480
        %v371 = vsel %vm370, %v365, %v367
        %v372 = vsel %vm370, %v367, %v369
        %v375 = vsel %vm337, %v371, 0.0
        %v376 = vsel %vm338, %v372, 0.0
        %377 = vrot.lane.b32.xlu0 %v343, 110
        %v378 = vpop.permute.xlu0 %377
        %379 = vrot.lane.b32.xlu0 %v344, 110
        %v380 = vpop.permute.xlu0 %379
        %381 = vrot.lane.b32.xlu0 %v347, 110
        %v382 = vpop.permute.xlu0 %381
        %vm383 = vcmask 900096
        %v384 = vsel %vm383, %v378, %v380
        %v385 = vsel %vm383, %v380, %v382
        %v388 = vsel %vm341, %v384, 0.0
        %v389 = vsel %vm342, %v385, 0.0
        %390 = vrot.lane.b32.xlu0 %v343, 96
        %v391 = vpop.permute.xlu0 %390
        %392 = vrot.lane.b32.xlu0 %v344, 96
        %v393 = vpop.permute.xlu0 %392
        %394 = vrot.lane.b32.xlu0 %v347, 96
        %v395 = vpop.permute.xlu0 %394
        %vm396 = vcmask 785408
        %v397 = vsel %vm396, %v391, %v393
        %v398 = vsel %vm396, %v393, %v395
        %v401 = vsel %vm337, %v397, 0.0
        %v402 = vsel %vm338, %v398, 0.0
        %403 = vrot.lane.b32.xlu0 %v343, 94
        %v404 = vpop.permute.xlu0 %403
        %405 = vrot.lane.b32.xlu0 %v344, 94
        %v406 = vpop.permute.xlu0 %405
        %407 = vrot.lane.b32.xlu0 %v347, 94
        %v408 = vpop.permute.xlu0 %407
        %vm409 = vcmask 769024
        %v410 = vsel %vm409, %v404, %v406
        %v411 = vsel %vm409, %v406, %v408
        %v414 = vsel %vm341, %v410, 0.0
        %v415 = vsel %vm342, %v411, 0.0
        %416 = vrot.lane.b32.xlu0 %v343, 127
        %v417 = vpop.permute.xlu0 %416
        %418 = vrot.lane.b32.xlu0 %v344, 127
        %v419 = vpop.permute.xlu0 %418
        %420 = vrot.lane.b32.xlu0 %v347, 127
        %v421 = vpop.permute.xlu0 %420
        %vm422 = vcmask 1039360
        %v423 = vsel %vm422, %v417, %v419
        %v424 = vsel %vm422, %v419, %v421
        %427 = vrot.lane.b32.xlu0 %v343, 111
        %v428 = vpop.permute.xlu0 %427
        %429 = vrot.lane.b32.xlu0 %v344, 111
        %v430 = vpop.permute.xlu0 %429
        %431 = vrot.lane.b32.xlu0 %v347, 111
        %v432 = vpop.permute.xlu0 %431
        %vm433 = vcmask 908288
        %v434 = vsel %vm433, %v428, %v430
        %v435 = vsel %vm433, %v430, %v432
        %438 = vrot.lane.b32.xlu0 %v343, 95
        %v439 = vpop.permute.xlu0 %438
        %440 = vrot.lane.b32.xlu0 %v344, 95
        %v441 = vpop.permute.xlu0 %440
        %442 = vrot.lane.b32.xlu0 %v347, 95
        %v443 = vpop.permute.xlu0 %442
        %vm444 = vcmask 777216
        %v445 = vsel %vm444, %v439, %v441
        %v446 = vsel %vm444, %v441, %v443
        %v449 = vld [vmem:[#allocation6] sm:$0xff]
        %v450 = vld [vmem:[#allocation6 + $0x8] sm:$0xff]
        %v451 = vld [vmem:[%s2] sm:$0xff]
        %v452 = vld [vmem:[%s2 + $0x8] sm:$0xff]
        %454 = vset.pattern.permute.xlu0 0
        %455 = vperm.xlu0 %454, %v451
        %v456 = vpop.permute.xlu0 %455
        %459 = vset.pattern.permute.xlu0 0
        %460 = vperm.xlu0 %459, %v452
        %v461 = vpop.permute.xlu0 %460
        %vm463 = vcmask 588800
        %v465 = vsel %vm463, %v449, 0
        %v468 = vsel %vm463, %v450, 0
        %470 = vmatpush.msra.mxu0 0.0
        %471 = vmatpush.msra.mxu0 0.0
        %472 = vmatpush.msra.mxu0 0.0
        %473 = vmatpush.msra.mxu0 0.0
        %474 = vmatpush.msra.mxu0 0.0
        %475 = vmatpush.msra.mxu0 0.0
        %476 = vmatpush.msra.mxu0 0.0
        %477 = vmatpush.msra.mxu0 %v414
        %478 = vmatpush.msra.mxu0 %v445
        %479 = vmatpush.msra.mxu0 %v401
        %480 = vmatpush.msra.mxu0 %v388
        %481 = vmatpush.msra.mxu0 %v434
        %482 = vmatpush.msra.mxu0 %v375
        %483 = vmatpush.msra.mxu0 %v362
        %484 = vmatpush.msra.mxu0 %v423
        %485 = vmatpush.msra.mxu0 %v345
        %486 = vmatmul.f32.gmra.mxu0 %v465
        %v487 = vpop.f32.mrf.mxu0
        %v488 = vadd.f32 %v456, %v487
        %489 = vmatmul.f32.gmra.mxu0 %v468
        %v490 = vpop.f32.mrf.mxu0
        %v491 = vadd.f32 %v461, %v490
        %492 = vdwg.mxu0
        %493 = vmatpush.msra.mxu0 0.0
        %494 = vmatpush.msra.mxu0 0.0
        %495 = vmatpush.msra.mxu0 0.0
        %496 = vmatpush.msra.mxu0 0.0
        %497 = vmatpush.msra.mxu0 0.0
        %498 = vmatpush.msra.mxu0 0.0
        %499 = vmatpush.msra.mxu0 0.0
        %500 = vmatpush.msra.mxu0 %v415
        %501 = vmatpush.msra.mxu0 %v446
        %502 = vmatpush.msra.mxu0 %v402
        %503 = vmatpush.msra.mxu0 %v389
        %504 = vmatpush.msra.mxu0 %v435
        %505 = vmatpush.msra.mxu0 %v376
        %506 = vmatpush.msra.mxu0 %v363
        %507 = vmatpush.msra.mxu0 %v424
        %508 = vmatpush.msra.mxu0 %v346
        %509 = vmatmul.f32.gmra.mxu0 %v465
        %v510 = vpop.f32.mrf.mxu0
        %v511 = vadd.f32 %v456, %v510
        %512 = vmatmul.f32.gmra.mxu0 %v468
        %v513 = vpop.f32.mrf.mxu0
        %v514 = vadd.f32 %v461, %v513
        %515 = vdwg.mxu0
        %v516 = vmax.f32 %v488, 0.0
        %v517 = vmax.f32 %v511, 0.0
        %v518 = vmax.f32 %v491, 0.0
        %v519 = vmax.f32 %v514, 0.0
        %524 = vrot.lane.b32.xlu0 %v516, 17
        %v525 = vpop.permute.xlu0 %524
        %526 = vrot.lane.b32.xlu0 %v517, 17
        %v527 = vpop.permute.xlu0 %526
        %528 = vrot.lane.b32.xlu0 %v518, 17
        %v529 = vpop.permute.xlu0 %528
        %530 = vrot.lane.b32.xlu0 %v519, 17
        %v531 = vpop.permute.xlu0 %530
        %v532 = vsel %vm298, %v525, %v527
        %v533 = vsel %vm298, %v529, %v531
        %vm540 = vcmask 1047688
        %541 = vst.msk [vmem:[#allocation2] sm:$0xff] %vm540, %v525
        %542 = vst [vmem:[#allocation2 + $0x8] sm:$0xff] %v532
        %543 = vst.msk [vmem:[#allocation2 + $0x10] sm:$0xff] %vm298, %v527
        %544 = vst.msk [vmem:[#allocation2 + $0x18] sm:$0xff] %vm540, %v529
        %545 = vst [vmem:[#allocation2 + $0x20] sm:$0xff] %v533
        %546 = vst.msk [vmem:[#allocation2 + $0x28] sm:$0xff] %vm298, %v531
        %v547 = vld [vmem:[#allocation2] sm:$0xff]
        %v548 = vld [vmem:[#allocation2 + $0x8] sm:$0xff]
        %v549 = vld [vmem:[#allocation2 + $0x18] sm:$0xff]
        %v550 = vld [vmem:[#allocation2 + $0x20] sm:$0xff]
        %v551 = vsel %vm337, %v547, 0.0
        %v552 = vsel %vm338, %v548, 0.0
        %v553 = vsel %vm337, %v549, 0.0
        %v554 = vsel %vm338, %v550, 0.0
        %v555 = vld [vmem:[#allocation2 + $0x10] sm:$0xff]
        %v556 = vld [vmem:[#allocation2 + $0x28] sm:$0xff]
        %563 = vrot.lane.b32.xlu0 %v547, 126
        %v564 = vpop.permute.xlu0 %563
        %565 = vrot.lane.b32.xlu0 %v548, 126
        %v566 = vpop.permute.xlu0 %565
        %567 = vrot.lane.b32.xlu0 %v555, 126
        %v568 = vpop.permute.xlu0 %567
        %569 = vrot.lane.b32.xlu0 %v549, 126
        %v570 = vpop.permute.xlu0 %569
        %571 = vrot.lane.b32.xlu0 %v550, 126
        %v572 = vpop.permute.xlu0 %571
        %573 = vrot.lane.b32.xlu0 %v556, 126
        %v574 = vpop.permute.xlu0 %573
        %v575 = vsel %vm357, %v564, %v566
        %v576 = vsel %vm357, %v566, %v568
        %v577 = vsel %vm357, %v570, %v572
        %v578 = vsel %vm357, %v572, %v574
        %v583 = vsel %vm341, %v575, 0.0
        %v584 = vsel %vm342, %v576, 0.0
        %v585 = vsel %vm341, %v577, 0.0
        %v586 = vsel %vm342, %v578, 0.0
        %587 = vrot.lane.b32.xlu0 %v547, 112
        %v588 = vpop.permute.xlu0 %587
        %589 = vrot.lane.b32.xlu0 %v548, 112
        %v590 = vpop.permute.xlu0 %589
        %591 = vrot.lane.b32.xlu0 %v555, 112
        %v592 = vpop.permute.xlu0 %591
        %593 = vrot.lane.b32.xlu0 %v549, 112
        %v594 = vpop.permute.xlu0 %593
        %595 = vrot.lane.b32.xlu0 %v550, 112
        %v596 = vpop.permute.xlu0 %595
        %597 = vrot.lane.b32.xlu0 %v556, 112
        %v598 = vpop.permute.xlu0 %597
        %v599 = vsel %vm370, %v588, %v590
        %v600 = vsel %vm370, %v590, %v592
        %v601 = vsel %vm370, %v594, %v596
        %v602 = vsel %vm370, %v596, %v598
        %v607 = vsel %vm337, %v599, 0.0
        %v608 = vsel %vm338, %v600, 0.0
        %v609 = vsel %vm337, %v601, 0.0
        %v610 = vsel %vm338, %v602, 0.0
        %611 = vrot.lane.b32.xlu0 %v547, 110
        %v612 = vpop.permute.xlu0 %611
        %613 = vrot.lane.b32.xlu0 %v548, 110
        %v614 = vpop.permute.xlu0 %613
        %615 = vrot.lane.b32.xlu0 %v555, 110
        %v616 = vpop.permute.xlu0 %615
        %617 = vrot.lane.b32.xlu0 %v549, 110
        %v618 = vpop.permute.xlu0 %617
        %619 = vrot.lane.b32.xlu0 %v550, 110
        %v620 = vpop.permute.xlu0 %619
        %621 = vrot.lane.b32.xlu0 %v556, 110
        %v622 = vpop.permute.xlu0 %621
        %v623 = vsel %vm383, %v612, %v614
        %v624 = vsel %vm383, %v614, %v616
        %v625 = vsel %vm383, %v618, %v620
        %v626 = vsel %vm383, %v620, %v622
        %v631 = vsel %vm341, %v623, 0.0
        %v632 = vsel %vm342, %v624, 0.0
        %v633 = vsel %vm341, %v625, 0.0
        %v634 = vsel %vm342, %v626, 0.0
        %635 = vrot.lane.b32.xlu0 %v547, 96
        %v636 = vpop.permute.xlu0 %635
        %637 = vrot.lane.b32.xlu0 %v548, 96
        %v638 = vpop.permute.xlu0 %637
        %639 = vrot.lane.b32.xlu0 %v555, 96
        %v640 = vpop.permute.xlu0 %639
        %641 = vrot.lane.b32.xlu0 %v549, 96
        %v642 = vpop.permute.xlu0 %641
        %643 = vrot.lane.b32.xlu0 %v550, 96
        %v644 = vpop.permute.xlu0 %643
        %645 = vrot.lane.b32.xlu0 %v556, 96
        %v646 = vpop.permute.xlu0 %645
        %v647 = vsel %vm396, %v636, %v638
        %v648 = vsel %vm396, %v638, %v640
        %v649 = vsel %vm396, %v642, %v644
        %v650 = vsel %vm396, %v644, %v646
        %v655 = vsel %vm337, %v647, 0.0
        %v656 = vsel %vm338, %v648, 0.0
        %v657 = vsel %vm337, %v649, 0.0
        %v658 = vsel %vm338, %v650, 0.0
        %659 = vrot.lane.b32.xlu0 %v547, 94
        %v660 = vpop.permute.xlu0 %659
        %661 = vrot.lane.b32.xlu0 %v548, 94
        %v662 = vpop.permute.xlu0 %661
        %663 = vrot.lane.b32.xlu0 %v555, 94
        %v664 = vpop.permute.xlu0 %663
        %665 = vrot.lane.b32.xlu0 %v549, 94
        %v666 = vpop.permute.xlu0 %665
        %667 = vrot.lane.b32.xlu0 %v550, 94
        %v668 = vpop.permute.xlu0 %667
        %669 = vrot.lane.b32.xlu0 %v556, 94
        %v670 = vpop.permute.xlu0 %669
        %v671 = vsel %vm409, %v660, %v662
        %v672 = vsel %vm409, %v662, %v664
        %v673 = vsel %vm409, %v666, %v668
        %v674 = vsel %vm409, %v668, %v670
        %v679 = vsel %vm341, %v671, 0.0
        %v680 = vsel %vm342, %v672, 0.0
        %v681 = vsel %vm341, %v673, 0.0
        %v682 = vsel %vm342, %v674, 0.0
        %683 = vrot.lane.b32.xlu0 %v547, 127
        %v684 = vpop.permute.xlu0 %683
        %685 = vrot.lane.b32.xlu0 %v548, 127
        %v686 = vpop.permute.xlu0 %685
        %687 = vrot.lane.b32.xlu0 %v555, 127
        %v688 = vpop.permute.xlu0 %687
        %689 = vrot.lane.b32.xlu0 %v549, 127
        %v690 = vpop.permute.xlu0 %689
        %691 = vrot.lane.b32.xlu0 %v550, 127
        %v692 = vpop.permute.xlu0 %691
        %693 = vrot.lane.b32.xlu0 %v556, 127
        %v694 = vpop.permute.xlu0 %693
        %v695 = vsel %vm422, %v684, %v686
        %v696 = vsel %vm422, %v686, %v688
        %v697 = vsel %vm422, %v690, %v692
        %v698 = vsel %vm422, %v692, %v694
        %703 = vrot.lane.b32.xlu0 %v547, 111
        %v704 = vpop.permute.xlu0 %703
        %705 = vrot.lane.b32.xlu0 %v548, 111
        %v706 = vpop.permute.xlu0 %705
        %707 = vrot.lane.b32.xlu0 %v555, 111
        %v708 = vpop.permute.xlu0 %707
        %709 = vrot.lane.b32.xlu0 %v549, 111
        %v710 = vpop.permute.xlu0 %709
        %711 = vrot.lane.b32.xlu0 %v550, 111
        %v712 = vpop.permute.xlu0 %711
        %713 = vrot.lane.b32.xlu0 %v556, 111
        %v714 = vpop.permute.xlu0 %713
        %v715 = vsel %vm433, %v704, %v706
        %v716 = vsel %vm433, %v706, %v708
        %v717 = vsel %vm433, %v710, %v712
        %v718 = vsel %vm433, %v712, %v714
        %723 = vrot.lane.b32.xlu0 %v547, 95
        %v724 = vpop.permute.xlu0 %723
        %725 = vrot.lane.b32.xlu0 %v548, 95
        %v726 = vpop.permute.xlu0 %725
        %727 = vrot.lane.b32.xlu0 %v555, 95
        %v728 = vpop.permute.xlu0 %727
        %729 = vrot.lane.b32.xlu0 %v549, 95
        %v730 = vpop.permute.xlu0 %729
        %731 = vrot.lane.b32.xlu0 %v550, 95
        %v732 = vpop.permute.xlu0 %731
        %733 = vrot.lane.b32.xlu0 %v556, 95
        %v734 = vpop.permute.xlu0 %733
        %v735 = vsel %vm444, %v724, %v726
        %v736 = vsel %vm444, %v726, %v728
        %v737 = vsel %vm444, %v730, %v732
        %v738 = vsel %vm444, %v732, %v734
        %v743 = vld [vmem:[%s3] sm:$0xff]
        %v744 = vld [vmem:[%s3 + $0x8] sm:$0xff]
        %v745 = vld [vmem:[%s3 + $0x10] sm:$0xff]
        %v746 = vld [vmem:[%s3 + $0x18] sm:$0xff]
        %v747 = vld [vmem:[%s4] sm:$0xff]
        %v748 = vld [vmem:[%s4 + $0x8] sm:$0xff]
        %750 = vset.pattern.permute.xlu0 0
        %751 = vperm.xlu0 %750, %v747
        %v752 = vpop.permute.xlu0 %751
        %755 = vset.pattern.permute.xlu0 0
        %756 = vperm.xlu0 %755, %v748
        %v757 = vpop.permute.xlu0 %756
        %vm759 = vcmask 130048
        %v761 = vsel %vm759, %v744, 0
        %v764 = vsel %vm759, %v746, 0
        %766 = vmatpush.msra.mxu0 %v737
        %767 = vmatpush.msra.mxu0 %v735
        %768 = vmatpush.msra.mxu0 %v657
        %769 = vmatpush.msra.mxu0 %v655
        %770 = vmatpush.msra.mxu0 %v633
        %771 = vmatpush.msra.mxu0 %v631
        %772 = vmatpush.msra.mxu0 %v717
        %773 = vmatpush.msra.mxu0 %v715
        %774 = vmatpush.msra.mxu0 %v609
        %775 = vmatpush.msra.mxu0 %v607
        %776 = vmatpush.msra.mxu0 %v585
        %777 = vmatpush.msra.mxu0 %v583
        %778 = vmatpush.msra.mxu0 %v697
        %779 = vmatpush.msra.mxu0 %v695
        %780 = vmatpush.msra.mxu0 %v553
        %781 = vmatpush.msra.mxu0 %v551
        %782 = vmatmul.f32.gmra.mxu0 %v743
        %v783 = vpop.f32.mrf.mxu0
        %v784 = vadd.f32 %v752, %v783
        %785 = vmatmul.f32.gmra.mxu0 %v745
        %v786 = vpop.f32.mrf.mxu0
        %v787 = vadd.f32 %v757, %v786
        %788 = vdwg.mxu0
        %789 = vmatpush.msra.mxu0 0.0
        %790 = vmatpush.msra.mxu0 0.0
        %791 = vmatpush.msra.mxu0 0.0
        %792 = vmatpush.msra.mxu0 0.0
        %793 = vmatpush.msra.mxu0 0.0
        %794 = vmatpush.msra.mxu0 0.0
        %795 = vmatpush.msra.mxu0 0.0
        %796 = vmatpush.msra.mxu0 0.0
        %797 = vmatpush.msra.mxu0 0.0
        %798 = vmatpush.msra.mxu0 0.0
        %799 = vmatpush.msra.mxu0 0.0
        %800 = vmatpush.msra.mxu0 0.0
        %801 = vmatpush.msra.mxu0 0.0
        %802 = vmatpush.msra.mxu0 0.0
        %803 = vmatpush.msra.mxu0 %v681
        %804 = vmatpush.msra.mxu0 %v679
        %805 = vmatmul.f32.gmra.mxu0 %v761
        %v806 = vpop.f32.mrf.mxu0
        %v807 = vadd.f32 %v784, %v806
        %808 = vmatmul.f32.gmra.mxu0 %v764
        %v809 = vpop.f32.mrf.mxu0
        %v810 = vadd.f32 %v787, %v809
        %811 = vdwg.mxu0
        %812 = vmatpush.msra.mxu0 %v738
        %813 = vmatpush.msra.mxu0 %v736
        %814 = vmatpush.msra.mxu0 %v658
        %815 = vmatpush.msra.mxu0 %v656
        %816 = vmatpush.msra.mxu0 %v634
        %817 = vmatpush.msra.mxu0 %v632
        %818 = vmatpush.msra.mxu0 %v718
        %819 = vmatpush.msra.mxu0 %v716
        %820 = vmatpush.msra.mxu0 %v610
        %821 = vmatpush.msra.mxu0 %v608
        %822 = vmatpush.msra.mxu0 %v586
        %823 = vmatpush.msra.mxu0 %v584
        %824 = vmatpush.msra.mxu0 %v698
        %825 = vmatpush.msra.mxu0 %v696
        %826 = vmatpush.msra.mxu0 %v554
        %827 = vmatpush.msra.mxu0 %v552
        %828 = vmatmul.f32.gmra.mxu0 %v743
        %v829 = vpop.f32.mrf.mxu0
        %v830 = vadd.f32 %v752, %v829
        %831 = vmatmul.f32.gmra.mxu0 %v745
        %v832 = vpop.f32.mrf.mxu0
        %v833 = vadd.f32 %v757, %v832
        %834 = vdwg.mxu0
        %835 = vmatpush.msra.mxu0 0.0
        %836 = vmatpush.msra.mxu0 0.0
        %837 = vmatpush.msra.mxu0 0.0
        %838 = vmatpush.msra.mxu0 0.0
        %839 = vmatpush.msra.mxu0 0.0
        %840 = vmatpush.msra.mxu0 0.0
        %841 = vmatpush.msra.mxu0 0.0
        %842 = vmatpush.msra.mxu0 0.0
        %843 = vmatpush.msra.mxu0 0.0
        %844 = vmatpush.msra.mxu0 0.0
        %845 = vmatpush.msra.mxu0 0.0
        %846 = vmatpush.msra.mxu0 0.0
        %847 = vmatpush.msra.mxu0 0.0
        %848 = vmatpush.msra.mxu0 0.0
        %849 = vmatpush.msra.mxu0 %v682
        %850 = vmatpush.msra.mxu0 %v680
        %851 = vmatmul.f32.gmra.mxu0 %v761
        %v852 = vpop.f32.mrf.mxu0
        %v853 = vadd.f32 %v830, %v852
        %854 = vmatmul.f32.gmra.mxu0 %v764
        %v855 = vpop.f32.mrf.mxu0
        %v856 = vadd.f32 %v833, %v855
        %857 = vdwg.mxu0
        %v858 = vmax.f32 %v807, 0.0
        %v859 = vmax.f32 %v853, 0.0
        %v860 = vmax.f32 %v810, 0.0
        %v861 = vmax.f32 %v856, 0.0
        %862 = vst [vmem:[%s297] sm:$0xff] %v858
        %863 = vst [vmem:[%s297 + $0x8] sm:$0xff] %v859
        %864 = vst [vmem:[%s297 + $0x10] sm:$0xff] %v860
        %865 = vst [vmem:[%s297 + $0x18] sm:$0xff] %v861
        %v866 = vlaneseq
        %v867 = vshrl.u32 %v866, 7
        %v868 = vadd.s32 %v867, 8
        %v869 = vmul.u32 %v305, 2
        %vm870 = vcmp.eq.s32.totalorder %v867, %v869
        %vm871 = vcmp.eq.s32.totalorder %v868, %v869
        %v872 = vsel %vm870, 1, 0
        %v873 = vsel %vm871, 1, 0
        %v874 = vcvt.s32.f32 %v872
        %v875 = vcvt.s32.f32 %v873
        %v876 = vadd.s32 %v869, 1
        %vm877 = vcmp.eq.s32.totalorder %v867, %v876
        %vm878 = vcmp.eq.s32.totalorder %v868, %v876
        %v879 = vsel %vm877, 1, 0
        %v880 = vsel %vm878, 1, 0
        %v881 = vcvt.s32.f32 %v879
        %v882 = vcvt.s32.f32 %v880
        %885 = vrot.lane.b32.xlu0 %v858, 112
        %v886 = vpop.permute.xlu0 %885
        %887 = vrot.lane.b32.xlu0 %v860, 112
        %v888 = vpop.permute.xlu0 %887
        %v891 = vmax.f32 %v858, %v886
        %v892 = vmax.f32 %v860, %v888
        %v894 = vsel %vm759, %v891, 0
        %v897 = vsel %vm759, %v892, 0
        %899 = vmatpush.msra.mxu0 0.0
        %900 = vmatpush.msra.mxu0 0.0
        %901 = vmatpush.msra.mxu0 0.0
        %902 = vmatpush.msra.mxu0 0.0
        %903 = vmatpush.msra.mxu0 0.0
        %904 = vmatpush.msra.mxu0 0.0
        %905 = vmatpush.msra.mxu0 0.0
        %906 = vmatpush.msra.mxu0 0.0
        %907 = vmatpush.msra.mxu0 0.0
        %908 = vmatpush.msra.mxu0 0.0
        %909 = vmatpush.msra.mxu0 0.0
        %910 = vmatpush.msra.mxu0 0.0
        %911 = vmatpush.msra.mxu0 0.0
        %912 = vmatpush.msra.mxu0 0.0
        %913 = vmatpush.msra.mxu0 %v875
        %914 = vmatpush.msra.mxu0 %v874
        %915 = vmatmul.f32.gmra.mxu0 %v894
        %v916 = vpop.f32.mrf.mxu0
        %v917 = vadd.f32 0.0, %v916
        %918 = vmatmul.f32.gmra.mxu0 %v897
        %v919 = vpop.f32.mrf.mxu0
        %v920 = vadd.f32 0.0, %v919
        %921 = vdwg.mxu0
        %922 = vmatpush.msra.mxu0 0.0
        %923 = vmatpush.msra.mxu0 0.0
        %924 = vmatpush.msra.mxu0 0.0
        %925 = vmatpush.msra.mxu0 0.0
        %926 = vmatpush.msra.mxu0 0.0
        %927 = vmatpush.msra.mxu0 0.0
        %928 = vmatpush.msra.mxu0 0.0
        %929 = vmatpush.msra.mxu0 0.0
        %930 = vmatpush.msra.mxu0 0.0
        %931 = vmatpush.msra.mxu0 0.0
        %932 = vmatpush.msra.mxu0 0.0
        %933 = vmatpush.msra.mxu0 0.0
        %934 = vmatpush.msra.mxu0 0.0
        %935 = vmatpush.msra.mxu0 0.0
        %936 = vmatpush.msra.mxu0 %v882
        %937 = vmatpush.msra.mxu0 %v881
        %938 = vmatmul.f32.gmra.mxu0 %v894
        %v939 = vpop.f32.mrf.mxu0
        %v940 = vadd.f32 0.0, %v939
        %941 = vmatmul.f32.gmra.mxu0 %v897
        %v942 = vpop.f32.mrf.mxu0
        %v943 = vadd.f32 0.0, %v942
        %944 = vdwg.mxu0
        %v945 = vmax.f32 %v917, %v940
        %v946 = vmax.f32 %v920, %v943
        %947 = vrot.lane.b32.xlu0 %v891, 96
        %v948 = vpop.permute.xlu0 %947
        %949 = vrot.lane.b32.xlu0 %v892, 96
        %v950 = vpop.permute.xlu0 %949
        %v951 = vsel %vm759, %v948, 0
        %v953 = vsel %vm759, %v950, 0
        %955 = vmatpush.msra.mxu0 0.0
        %956 = vmatpush.msra.mxu0 0.0
        %957 = vmatpush.msra.mxu0 0.0
        %958 = vmatpush.msra.mxu0 0.0
        %959 = vmatpush.msra.mxu0 0.0
        %960 = vmatpush.msra.mxu0 0.0
        %961 = vmatpush.msra.mxu0 0.0
        %962 = vmatpush.msra.mxu0 0.0
        %963 = vmatpush.msra.mxu0 0.0
        %964 = vmatpush.msra.mxu0 0.0
        %965 = vmatpush.msra.mxu0 0.0
        %966 = vmatpush.msra.mxu0 0.0
        %967 = vmatpush.msra.mxu0 0.0
        %968 = vmatpush.msra.mxu0 0.0
        %969 = vmatpush.msra.mxu0 %v875
        %970 = vmatpush.msra.mxu0 %v874
        %971 = vmatmul.f32.gmra.mxu0 %v951
        %v972 = vpop.f32.mrf.mxu0
        %v973 = vadd.f32 0.0, %v972
        %974 = vmatmul.f32.gmra.mxu0 %v953
        %v975 = vpop.f32.mrf.mxu0
        %v976 = vadd.f32 0.0, %v975
        %977 = vdwg.mxu0
        %978 = vmatpush.msra.mxu0 0.0
        %979 = vmatpush.msra.mxu0 0.0
        %980 = vmatpush.msra.mxu0 0.0
        %981 = vmatpush.msra.mxu0 0.0
        %982 = vmatpush.msra.mxu0 0.0
        %983 = vmatpush.msra.mxu0 0.0
        %984 = vmatpush.msra.mxu0 0.0
        %985 = vmatpush.msra.mxu0 0.0
        %986 = vmatpush.msra.mxu0 0.0
        %987 = vmatpush.msra.mxu0 0.0
        %988 = vmatpush.msra.mxu0 0.0
        %989 = vmatpush.msra.mxu0 0.0
        %990 = vmatpush.msra.mxu0 0.0
        %991 = vmatpush.msra.mxu0 0.0
        %992 = vmatpush.msra.mxu0 %v882
        %993 = vmatpush.msra.mxu0 %v881
        %994 = vmatmul.f32.gmra.mxu0 %v951
        %v995 = vpop.f32.mrf.mxu0
        %v996 = vadd.f32 0.0, %v995
        %997 = vmatmul.f32.gmra.mxu0 %v953
        %v998 = vpop.f32.mrf.mxu0
        %v999 = vadd.f32 0.0, %v998
        %1000 = vdwg.mxu0
        %v1001 = vmax.f32 %v973, %v996
        %v1002 = vmax.f32 %v976, %v999
        %1003 = vrot.lane.b32.xlu0 %v891, 64
        %v1004 = vpop.permute.xlu0 %1003
        %1005 = vrot.lane.b32.xlu0 %v892, 64
        %v1006 = vpop.permute.xlu0 %1005
        %v1007 = vsel %vm759, %v1004, 0
        %v1009 = vsel %vm759, %v1006, 0
        %1011 = vmatpush.msra.mxu0 0.0
        %1012 = vmatpush.msra.mxu0 0.0
        %1013 = vmatpush.msra.mxu0 0.0
        %1014 = vmatpush.msra.mxu0 0.0
        %1015 = vmatpush.msra.mxu0 0.0
        %1016 = vmatpush.msra.mxu0 0.0
        %1017 = vmatpush.msra.mxu0 0.0
        %1018 = vmatpush.msra.mxu0 0.0
        %1019 = vmatpush.msra.mxu0 0.0
        %1020 = vmatpush.msra.mxu0 0.0
        %1021 = vmatpush.msra.mxu0 0.0
        %1022 = vmatpush.msra.mxu0 0.0
        %1023 = vmatpush.msra.mxu0 0.0
        %1024 = vmatpush.msra.mxu0 0.0
        %1025 = vmatpush.msra.mxu0 %v875
        %1026 = vmatpush.msra.mxu0 %v874
        %1027 = vmatmul.f32.gmra.mxu0 %v1007
        %v1028 = vpop.f32.mrf.mxu0
        %v1029 = vadd.f32 0.0, %v1028
        %1030 = vmatmul.f32.gmra.mxu0 %v1009
        %v1031 = vpop.f32.mrf.mxu0
        %v1032 = vadd.f32 0.0, %v1031
        %1033 = vdwg.mxu0
        %1034 = vmatpush.msra.mxu0 0.0
        %1035 = vmatpush.msra.mxu0 0.0
        %1036 = vmatpush.msra.mxu0 0.0
        %1037 = vmatpush.msra.mxu0 0.0
        %1038 = vmatpush.msra.mxu0 0.0
        %1039 = vmatpush.msra.mxu0 0.0
        %1040 = vmatpush.msra.mxu0 0.0
        %1041 = vmatpush.msra.mxu0 0.0
        %1042 = vmatpush.msra.mxu0 0.0
        %1043 = vmatpush.msra.mxu0 0.0
        %1044 = vmatpush.msra.mxu0 0.0
        %1045 = vmatpush.msra.mxu0 0.0
        %1046 = vmatpush.msra.mxu0 0.0
        %1047 = vmatpush.msra.mxu0 0.0
        %1048 = vmatpush.msra.mxu0 %v882
        %1049 = vmatpush.msra.mxu0 %v881
        %1050 = vmatmul.f32.gmra.mxu0 %v1007
        %v1051 = vpop.f32.mrf.mxu0
        %v1052 = vadd.f32 0.0, %v1051
        %1053 = vmatmul.f32.gmra.mxu0 %v1009
        %v1054 = vpop.f32.mrf.mxu0
        %v1055 = vadd.f32 0.0, %v1054
        %1056 = vdwg.mxu0
        %v1057 = vmax.f32 %v1029, %v1052
        %v1058 = vmax.f32 %v1032, %v1055
        %1059 = vrot.lane.b32.xlu0 %v891, 32
        %v1060 = vpop.permute.xlu0 %1059
        %1061 = vrot.lane.b32.xlu0 %v892, 32
        %v1062 = vpop.permute.xlu0 %1061
        %v1063 = vsel %vm759, %v1060, 0
        %v1065 = vsel %vm759, %v1062, 0
        %1067 = vmatpush.msra.mxu0 0.0
        %1068 = vmatpush.msra.mxu0 0.0
        %1069 = vmatpush.msra.mxu0 0.0
        %1070 = vmatpush.msra.mxu0 0.0
        %1071 = vmatpush.msra.mxu0 0.0
        %1072 = vmatpush.msra.mxu0 0.0
        %1073 = vmatpush.msra.mxu0 0.0
        %1074 = vmatpush.msra.mxu0 0.0
        %1075 = vmatpush.msra.mxu0 0.0
        %1076 = vmatpush.msra.mxu0 0.0
        %1077 = vmatpush.msra.mxu0 0.0
        %1078 = vmatpush.msra.mxu0 0.0
        %1079 = vmatpush.msra.mxu0 0.0
        %1080 = vmatpush.msra.mxu0 0.0
        %1081 = vmatpush.msra.mxu0 %v875
        %1082 = vmatpush.msra.mxu0 %v874
        %1083 = vmatmul.f32.gmra.mxu0 %v1063
        %v1084 = vpop.f32.mrf.mxu0
        %v1085 = vadd.f32 0.0, %v1084
        %1086 = vmatmul.f32.gmra.mxu0 %v1065
        %v1087 = vpop.f32.mrf.mxu0
        %v1088 = vadd.f32 0.0, %v1087
        %1089 = vdwg.mxu0
        %1090 = vmatpush.msra.mxu0 0.0
        %1091 = vmatpush.msra.mxu0 0.0
        %1092 = vmatpush.msra.mxu0 0.0
        %1093 = vmatpush.msra.mxu0 0.0
        %1094 = vmatpush.msra.mxu0 0.0
        %1095 = vmatpush.msra.mxu0 0.0
        %1096 = vmatpush.msra.mxu0 0.0
        %1097 = vmatpush.msra.mxu0 0.0
        %1098 = vmatpush.msra.mxu0 0.0
        %1099 = vmatpush.msra.mxu0 0.0
        %1100 = vmatpush.msra.mxu0 0.0
        %1101 = vmatpush.msra.mxu0 0.0
        %1102 = vmatpush.msra.mxu0 0.0
        %1103 = vmatpush.msra.mxu0 0.0
        %1104 = vmatpush.msra.mxu0 %v882
        %1105 = vmatpush.msra.mxu0 %v881
        %1106 = vmatmul.f32.gmra.mxu0 %v1063
        %v1107 = vpop.f32.mrf.mxu0
        %v1108 = vadd.f32 0.0, %v1107
        %1109 = vmatmul.f32.gmra.mxu0 %v1065
        %v1110 = vpop.f32.mrf.mxu0
        %v1111 = vadd.f32 0.0, %v1110
        %1112 = vdwg.mxu0
        %v1113 = vmax.f32 %v1085, %v1108
        %v1114 = vmax.f32 %v1088, %v1111
        %1117 = vrot.lane.b32.xlu0 %v859, 112
        %v1118 = vpop.permute.xlu0 %1117
        %1119 = vrot.lane.b32.xlu0 %v861, 112
        %v1120 = vpop.permute.xlu0 %1119
        %v1123 = vmax.f32 %v859, %v1118
        %v1124 = vmax.f32 %v861, %v1120
        %v1126 = vsel %vm759, %v1123, 0
        %v1129 = vsel %vm759, %v1124, 0
        %1131 = vmatpush.msra.mxu0 0.0
        %1132 = vmatpush.msra.mxu0 0.0
        %1133 = vmatpush.msra.mxu0 0.0
        %1134 = vmatpush.msra.mxu0 0.0
        %1135 = vmatpush.msra.mxu0 0.0
        %1136 = vmatpush.msra.mxu0 0.0
        %1137 = vmatpush.msra.mxu0 0.0
        %1138 = vmatpush.msra.mxu0 0.0
        %1139 = vmatpush.msra.mxu0 0.0
        %1140 = vmatpush.msra.mxu0 0.0
        %1141 = vmatpush.msra.mxu0 0.0
        %1142 = vmatpush.msra.mxu0 0.0
        %1143 = vmatpush.msra.mxu0 0.0
        %1144 = vmatpush.msra.mxu0 0.0
        %1145 = vmatpush.msra.mxu0 %v875
        %1146 = vmatpush.msra.mxu0 %v874
        %1147 = vmatmul.f32.gmra.mxu0 %v1126
        %v1148 = vpop.f32.mrf.mxu0
        %v1149 = vadd.f32 0.0, %v1148
        %1150 = vmatmul.f32.gmra.mxu0 %v1129
        %v1151 = vpop.f32.mrf.mxu0
        %v1152 = vadd.f32 0.0, %v1151
        %1153 = vdwg.mxu0
        %1154 = vmatpush.msra.mxu0 0.0
        %1155 = vmatpush.msra.mxu0 0.0
        %1156 = vmatpush.msra.mxu0 0.0
        %1157 = vmatpush.msra.mxu0 0.0
        %1158 = vmatpush.msra.mxu0 0.0
        %1159 = vmatpush.msra.mxu0 0.0
        %1160 = vmatpush.msra.mxu0 0.0
        %1161 = vmatpush.msra.mxu0 0.0
        %1162 = vmatpush.msra.mxu0 0.0
        %1163 = vmatpush.msra.mxu0 0.0
        %1164 = vmatpush.msra.mxu0 0.0
        %1165 = vmatpush.msra.mxu0 0.0
        %1166 = vmatpush.msra.mxu0 0.0
        %1167 = vmatpush.msra.mxu0 0.0
        %1168 = vmatpush.msra.mxu0 %v882
        %1169 = vmatpush.msra.mxu0 %v881
        %1170 = vmatmul.f32.gmra.mxu0 %v1126
        %v1171 = vpop.f32.mrf.mxu0
        %v1172 = vadd.f32 0.0, %v1171
        %1173 = vmatmul.f32.gmra.mxu0 %v1129
        %v1174 = vpop.f32.mrf.mxu0
        %v1175 = vadd.f32 0.0, %v1174
        %1176 = vdwg.mxu0
        %v1177 = vmax.f32 %v1149, %v1172
        %v1178 = vmax.f32 %v1152, %v1175
        %1179 = vrot.lane.b32.xlu0 %v1123, 96
        %v1180 = vpop.permute.xlu0 %1179
        %1181 = vrot.lane.b32.xlu0 %v1124, 96
        %v1182 = vpop.permute.xlu0 %1181
        %v1183 = vsel %vm759, %v1180, 0
        %v1185 = vsel %vm759, %v1182, 0
        %1187 = vmatpush.msra.mxu0 0.0
        %1188 = vmatpush.msra.mxu0 0.0
        %1189 = vmatpush.msra.mxu0 0.0
        %1190 = vmatpush.msra.mxu0 0.0
        %1191 = vmatpush.msra.mxu0 0.0
        %1192 = vmatpush.msra.mxu0 0.0
        %1193 = vmatpush.msra.mxu0 0.0
        %1194 = vmatpush.msra.mxu0 0.0
        %1195 = vmatpush.msra.mxu0 0.0
        %1196 = vmatpush.msra.mxu0 0.0
        %1197 = vmatpush.msra.mxu0 0.0
        %1198 = vmatpush.msra.mxu0 0.0
        %1199 = vmatpush.msra.mxu0 0.0
        %1200 = vmatpush.msra.mxu0 0.0
        %1201 = vmatpush.msra.mxu0 %v875
        %1202 = vmatpush.msra.mxu0 %v874
        %1203 = vmatmul.f32.gmra.mxu0 %v1183
        %v1204 = vpop.f32.mrf.mxu0
        %v1205 = vadd.f32 0.0, %v1204
        %1206 = vmatmul.f32.gmra.mxu0 %v1185
        %v1207 = vpop.f32.mrf.mxu0
        %v1208 = vadd.f32 0.0, %v1207
        %1209 = vdwg.mxu0
        %1210 = vmatpush.msra.mxu0 0.0
        %1211 = vmatpush.msra.mxu0 0.0
        %1212 = vmatpush.msra.mxu0 0.0
        %1213 = vmatpush.msra.mxu0 0.0
        %1214 = vmatpush.msra.mxu0 0.0
        %1215 = vmatpush.msra.mxu0 0.0
        %1216 = vmatpush.msra.mxu0 0.0
        %1217 = vmatpush.msra.mxu0 0.0
        %1218 = vmatpush.msra.mxu0 0.0
        %1219 = vmatpush.msra.mxu0 0.0
        %1220 = vmatpush.msra.mxu0 0.0
        %1221 = vmatpush.msra.mxu0 0.0
        %1222 = vmatpush.msra.mxu0 0.0
        %1223 = vmatpush.msra.mxu0 0.0
        %1224 = vmatpush.msra.mxu0 %v882
        %1225 = vmatpush.msra.mxu0 %v881
        %1226 = vmatmul.f32.gmra.mxu0 %v1183
        %v1227 = vpop.f32.mrf.mxu0
        %v1228 = vadd.f32 0.0, %v1227
        %1229 = vmatmul.f32.gmra.mxu0 %v1185
        %v1230 = vpop.f32.mrf.mxu0
        %v1231 = vadd.f32 0.0, %v1230
        %1232 = vdwg.mxu0
        %v1233 = vmax.f32 %v1205, %v1228
        %v1234 = vmax.f32 %v1208, %v1231
        %1235 = vrot.lane.b32.xlu0 %v1123, 64
        %v1236 = vpop.permute.xlu0 %1235
        %1237 = vrot.lane.b32.xlu0 %v1124, 64
        %v1238 = vpop.permute.xlu0 %1237
        %v1239 = vsel %vm759, %v1236, 0
        %v1241 = vsel %vm759, %v1238, 0
        %1243 = vmatpush.msra.mxu0 0.0
        %1244 = vmatpush.msra.mxu0 0.0
        %1245 = vmatpush.msra.mxu0 0.0
        %1246 = vmatpush.msra.mxu0 0.0
        %1247 = vmatpush.msra.mxu0 0.0
        %1248 = vmatpush.msra.mxu0 0.0
        %1249 = vmatpush.msra.mxu0 0.0
        %1250 = vmatpush.msra.mxu0 0.0
        %1251 = vmatpush.msra.mxu0 0.0
        %1252 = vmatpush.msra.mxu0 0.0
        %1253 = vmatpush.msra.mxu0 0.0
        %1254 = vmatpush.msra.mxu0 0.0
        %1255 = vmatpush.msra.mxu0 0.0
        %1256 = vmatpush.msra.mxu0 0.0
        %1257 = vmatpush.msra.mxu0 %v875
        %1258 = vmatpush.msra.mxu0 %v874
        %1259 = vmatmul.f32.gmra.mxu0 %v1239
        %v1260 = vpop.f32.mrf.mxu0
        %v1261 = vadd.f32 0.0, %v1260
        %1262 = vmatmul.f32.gmra.mxu0 %v1241
        %v1263 = vpop.f32.mrf.mxu0
        %v1264 = vadd.f32 0.0, %v1263
        %1265 = vdwg.mxu0
        %1266 = vmatpush.msra.mxu0 0.0
        %1267 = vmatpush.msra.mxu0 0.0
        %1268 = vmatpush.msra.mxu0 0.0
        %1269 = vmatpush.msra.mxu0 0.0
        %1270 = vmatpush.msra.mxu0 0.0
        %1271 = vmatpush.msra.mxu0 0.0
        %1272 = vmatpush.msra.mxu0 0.0
        %1273 = vmatpush.msra.mxu0 0.0
        %1274 = vmatpush.msra.mxu0 0.0
        %1275 = vmatpush.msra.mxu0 0.0
        %1276 = vmatpush.msra.mxu0 0.0
        %1277 = vmatpush.msra.mxu0 0.0
        %1278 = vmatpush.msra.mxu0 0.0
        %1279 = vmatpush.msra.mxu0 0.0
        %1280 = vmatpush.msra.mxu0 %v882
        %1281 = vmatpush.msra.mxu0 %v881
        %1282 = vmatmul.f32.gmra.mxu0 %v1239
        %v1283 = vpop.f32.mrf.mxu0
        %v1284 = vadd.f32 0.0, %v1283
        %1285 = vmatmul.f32.gmra.mxu0 %v1241
        %v1286 = vpop.f32.mrf.mxu0
        %v1287 = vadd.f32 0.0, %v1286
        %1288 = vdwg.mxu0
        %v1289 = vmax.f32 %v1261, %v1284
        %v1290 = vmax.f32 %v1264, %v1287
        %1291 = vrot.lane.b32.xlu0 %v1123, 32
        %v1292 = vpop.permute.xlu0 %1291
        %1293 = vrot.lane.b32.xlu0 %v1124, 32
        %v1294 = vpop.permute.xlu0 %1293
        %v1295 = vsel %vm759, %v1292, 0
        %v1297 = vsel %vm759, %v1294, 0
        %1299 = vmatpush.msra.mxu0 0.0
        %1300 = vmatpush.msra.mxu0 0.0
        %1301 = vmatpush.msra.mxu0 0.0
        %1302 = vmatpush.msra.mxu0 0.0
        %1303 = vmatpush.msra.mxu0 0.0
        %1304 = vmatpush.msra.mxu0 0.0
        %1305 = vmatpush.msra.mxu0 0.0
        %1306 = vmatpush.msra.mxu0 0.0
        %1307 = vmatpush.msra.mxu0 0.0
        %1308 = vmatpush.msra.mxu0 0.0
        %1309 = vmatpush.msra.mxu0 0.0
        %1310 = vmatpush.msra.mxu0 0.0
        %1311 = vmatpush.msra.mxu0 0.0
        %1312 = vmatpush.msra.mxu0 0.0
        %1313 = vmatpush.msra.mxu0 %v875
        %1314 = vmatpush.msra.mxu0 %v874
        %1315 = vmatmul.f32.gmra.mxu0 %v1295
        %v1316 = vpop.f32.mrf.mxu0
        %v1317 = vadd.f32 0.0, %v1316
        %1318 = vmatmul.f32.gmra.mxu0 %v1297
        %v1319 = vpop.f32.mrf.mxu0
        %v1320 = vadd.f32 0.0, %v1319
        %1321 = vdwg.mxu0
        %1322 = vmatpush.msra.mxu0 0.0
        %1323 = vmatpush.msra.mxu0 0.0
        %1324 = vmatpush.msra.mxu0 0.0
        %1325 = vmatpush.msra.mxu0 0.0
        %1326 = vmatpush.msra.mxu0 0.0
        %1327 = vmatpush.msra.mxu0 0.0
        %1328 = vmatpush.msra.mxu0 0.0
        %1329 = vmatpush.msra.mxu0 0.0
        %1330 = vmatpush.msra.mxu0 0.0
        %1331 = vmatpush.msra.mxu0 0.0
        %1332 = vmatpush.msra.mxu0 0.0
        %1333 = vmatpush.msra.mxu0 0.0
        %1334 = vmatpush.msra.mxu0 0.0
        %1335 = vmatpush.msra.mxu0 0.0
        %1336 = vmatpush.msra.mxu0 %v882
        %1337 = vmatpush.msra.mxu0 %v881
        %1338 = vmatmul.f32.gmra.mxu0 %v1295
        %v1339 = vpop.f32.mrf.mxu0
        %v1340 = vadd.f32 0.0, %v1339
        %1341 = vmatmul.f32.gmra.mxu0 %v1297
        %v1342 = vpop.f32.mrf.mxu0
        %v1343 = vadd.f32 0.0, %v1342
        %1344 = vdwg.mxu0
        %v1345 = vmax.f32 %v1317, %v1340
        %v1346 = vmax.f32 %v1320, %v1343
        %1349 = vrot.lane.b32.xlu0 %v1001, 8
        %v1350 = vpop.permute.xlu0 %1349
        %1351 = vrot.lane.b32.xlu0 %v1002, 8
        %v1352 = vpop.permute.xlu0 %1351
        %1357 = vrot.lane.b32.xlu0 %v1057, 16
        %v1358 = vpop.permute.xlu0 %1357
        %1359 = vrot.lane.b32.xlu0 %v1058, 16
        %v1360 = vpop.permute.xlu0 %1359
        %1365 = vrot.lane.b32.xlu0 %v1113, 24
        %v1366 = vpop.permute.xlu0 %1365
        %1367 = vrot.lane.b32.xlu0 %v1114, 24
        %v1368 = vpop.permute.xlu0 %1367
        %1373 = vrot.lane.b32.xlu0 %v1177, 32
        %v1374 = vpop.permute.xlu0 %1373
        %1375 = vrot.lane.b32.xlu0 %v1178, 32
        %v1376 = vpop.permute.xlu0 %1375
        %1381 = vrot.lane.b32.xlu0 %v1233, 40
        %v1382 = vpop.permute.xlu0 %1381
        %1383 = vrot.lane.b32.xlu0 %v1234, 40
        %v1384 = vpop.permute.xlu0 %1383
        %1389 = vrot.lane.b32.xlu0 %v1289, 48
        %v1390 = vpop.permute.xlu0 %1389
        %1391 = vrot.lane.b32.xlu0 %v1290, 48
        %v1392 = vpop.permute.xlu0 %1391
        %1397 = vrot.lane.b32.xlu0 %v1345, 56
        %v1398 = vpop.permute.xlu0 %1397
        %1399 = vrot.lane.b32.xlu0 %v1346, 56
        %v1400 = vpop.permute.xlu0 %1399
        %vm1403 = vcmask 64512
        %v1404 = vsel %vm1403, %v945, %v1350
        %v1405 = vsel %vm1403, %v946, %v1352
        %v1406 = vsel %vm759, %v1404, %v1358
        %v1407 = vsel %vm759, %v1405, %v1360
        %vm1408 = vcmask 195584
        %v1409 = vsel %vm1408, %v1406, %v1366
        %v1410 = vsel %vm1408, %v1407, %v1368
        %vm1411 = vcmask 261120
        %v1412 = vsel %vm1411, %v1409, %v1374
        %v1413 = vsel %vm1411, %v1410, %v1376
        %vm1414 = vcmask 326656
        %v1415 = vsel %vm1414, %v1412, %v1382
        %v1416 = vsel %vm1414, %v1413, %v1384
        %vm1417 = vcmask 392192
        %v1418 = vsel %vm1417, %v1415, %v1390
        %v1419 = vsel %vm1417, %v1416, %v1392
        %vm1420 = vcmask 457728
        %v1421 = vsel %vm1420, %v1418, %v1398
        %v1422 = vsel %vm1420, %v1419, %v1400
        %vm1423 = vcmask 523264
        %1424 = vst.msk [vmem:[%s290] sm:$0xff] %vm1423, %v1421
        %1425 = vst.msk [vmem:[%s290 + $0x8] sm:$0xff] %vm1423, %v1422
        %s1426 = sand.u32 %s146, 1
        %s1427 = scalar_lea.sflag [#allocation5], %s1426
        %s1428 = sand.u32 %s146, 1
        %s1429 = smul.addr %s1428, 16
        %s1430 = scalar_lea.vmem [#allocation8], %s1429
        %s1431 = sand.u32 %s172, 1
        %s1432 = scalar_lea.sflag [#allocation10], %s1431
        %s1433 = sand.u32 %s172, 1
        %s1434 = smul.addr %s1433, 32
        %s1435 = scalar_lea.vmem [#allocation9], %s1434
        // Predicated region
        $region49: #{tpu_custom_call.1} parent=39 // pred_check
          %p1436 = pneg %p156
        $region50: #{tpu_custom_call.1} parent=39 // pred_check_branch
          %1438 = sbr.rel (%p1436) target = $region52
        $region51: #{tpu_custom_call.1} parent=39 // pred_region
          %1440 = vsyncadd %s1427, 0
          %s1441 = smul.addr %s28, 2
          %s1442 = smul.addr %s1441, 8
          %s1443 = scalar_lea.hbm %s5, %s1442
          %s1444 = sshll.u32 %s1430, 4
          %s1445 = int_to_ptr.vmem [resolvable:$true] %s1444
          %s1446 = sshll.u32 %s1443, 4
          %s1447 = int_to_ptr.hbm [resolvable:$true] %s1446
          %1452 = dma.vmem_to_hbm [thread:$0]  %s1445, 256, %s1447, %s1427, 128, 128, 8
        $region52: #{tpu_custom_call.1} parent=39 // pred_fallthru
          _
        // Predicated region
        $region53: #{tpu_custom_call.1} parent=39 // pred_check
          %p1453 = pneg %p182
        $region54: #{tpu_custom_call.1} parent=39 // pred_check_branch
          %1455 = sbr.rel (%p1453) target = $region56
        $region55: #{tpu_custom_call.1} parent=39 // pred_region
          %1457 = vsyncadd %s1432, 0
          %s1458 = smul.addr %s28, 4
          %s1459 = smul.addr %s1458, 8
          %s1460 = scalar_lea.hbm %s6, %s1459
          %s1461 = sshll.u32 %s1435, 4
          %s1462 = int_to_ptr.vmem [resolvable:$true] %s1461
          %s1463 = sshll.u32 %s1460, 4
          %s1464 = int_to_ptr.hbm [resolvable:$true] %s1463
          %1469 = dma.vmem_to_hbm [thread:$0]  %s1462, 512, %s1464, %s1432, 256, 256, 16
        $region56: #{tpu_custom_call.1} parent=39 // pred_fallthru
          _
      $region40: #{tpu_custom_call.1} parent=5 // pred_fallthru
        _
      %p1470 = scmp.le.s32.totalorder 2, %s23
      // Predicated region
      $region57: #{tpu_custom_call.1} parent=5 // pred_check
        %p1471 = pneg %p1470
      $region58: #{tpu_custom_call.1} parent=5 // pred_check_branch
        %1473 = sbr.rel (%p1471) target = $region60
      $region59: #{tpu_custom_call.1} parent=5 // pred_region
        %s1474 = ssub.s32 %s23, 2
        // Predicated region
        $region61: #{tpu_custom_call.1} parent=59 // pred_check
          %p1475 = pneg %p162
        $region62: #{tpu_custom_call.1} parent=59 // pred_check_branch
          %1477 = sbr.rel (%p1475) target = $region64
        $region63: #{tpu_custom_call.1} parent=59 // pred_region
          %s1478 = sand.u32 %s147, 1
          %s1479 = scalar_lea.sflag [#allocation5], %s1478
          %s1480 = sand.u32 %s147, 1
          %s1481 = smul.addr %s1480, 16
          %s1482 = scalar_lea.vmem [#allocation8], %s1481
          %1484 = dma.done %s1479, 256
        $region64: #{tpu_custom_call.1} parent=59 // pred_fallthru
          _
        // Predicated region
        $region65: #{tpu_custom_call.1} parent=59 // pred_check
          %p1485 = pneg %p188
        $region66: #{tpu_custom_call.1} parent=59 // pred_check_branch
          %1487 = sbr.rel (%p1485) target = $region68
        $region67: #{tpu_custom_call.1} parent=59 // pred_region
          %s1488 = sand.u32 %s173, 1
          %s1489 = scalar_lea.sflag [#allocation10], %s1488
          %s1490 = sand.u32 %s173, 1
          %s1491 = smul.addr %s1490, 32
          %s1492 = scalar_lea.vmem [#allocation9], %s1491
          %1494 = dma.done %s1489, 512
        $region68: #{tpu_custom_call.1} parent=59 // pred_fallthru
          _
      $region60: #{tpu_custom_call.1} parent=5 // pred_fallthru
        _
    $region6: #{tpu_custom_call.1} parent=1 // loop_footer
      %s27 = sadd.s32 1, %s23
    $region7: #{tpu_custom_call.1} parent=1 // loop_footer_branch
      %22 = sbr.rel target = $region3
    $region8: #{tpu_custom_call.1} parent=1 // loop_exit
      _
    %1495 = vsyncpa [#allocation4], 1
    %s1496 = scalar_lea.sflag [#allocation4], 1
    %1497 = vsyncpa %s1496, 1
    %1498 = vsyncpa [#allocation7], 1
    %1499 = vsyncpa [#allocation5], 1
    %s1500 = scalar_lea.sflag [#allocation5], 1
    %1501 = vsyncpa %s1500, 1
    %1502 = vsyncpa [#allocation10], 1
    %s1503 = scalar_lea.sflag [#allocation10], 1
    %1504 = vsyncpa %s1503, 1

</llo_original>
